<compile_context>
chip_gen: v7x
topology: tpu7x:2x2x1
jax: 0.10.0
libtpu: 0.0.40
codegen_flags: <defaults>
</compile_context>

<pallas_src>
import functools

import jax
import jax.numpy as jnp
from jax.experimental import pallas as pl
from jax.experimental.pallas import tpu as pltpu


# -----------------------------------------------------------------------------
# Fused kernel: [conv3x3 -> InstanceNorm -> LeakyReLU] x 2, NB images per step
# -----------------------------------------------------------------------------
def _fused_convblock_kernel(H, W, Cin, Cmid, Cout, NB,
                            xp_ref,    # (NB*(H+2), W*Cin)   f32  H-halo row stack
                            w1_ref,    # (3, W*Cin,  W*Cmid) bf16 banded taps (dw folded)
                            gb1_ref,   # (2, W*Cmid)         f32  rows = (gamma, beta)
                            w2_ref,    # (3, W*Cmid, W*Cout) bf16
                            gb2_ref,   # (2, W*Cout)         f32
                            o_ref,     # (NB*H, W*Cout)      f32
                            h1_ref):   # (NB*(H+2), W*Cmid)  f32  VMEM scratch (stage-1 + halo)
    NBP = NB * (H + 2)
    M = NBP - 2                      # conv-output rows per matmul (incl. 2*(NB-1) junk rows)
    inv_hw = 1.0 / float(H * W)

    def lane_group_reduce(x, c):
        # Cyclic roll-and-add over the W channel-groups of size c along lanes.
        # Afterwards every lane holds the sum over its channel's W positions,
        # i.e. reduce + broadcast in one pass (XLU slot, free wrt the MXU).
        r = x
        shift = c
        while shift < W * c:
            r = r + pltpu.roll(r, shift, 1)
            shift *= 2
        return r

    def conv3(src_f32, w_ref):
        # 3x3 conv as 3 banded MXU matmuls; the dw shift lives in the weights.
        acc = None
        for dh in range(3):
            lhs = src_f32[dh:dh + M, :].astype(jnp.bfloat16)
            part = jnp.dot(lhs, w_ref[dh], preferred_element_type=jnp.float32)
            acc = part if acc is None else acc + part
        return acc                                   # (M, W*Cx) f32

    def inst_norm_lrelu(a, gb_ref, c):
        # InstanceNorm2d(affine=True, eps=1e-5, biased var) + LeakyReLU(0.01).
        # a: (H, W*c) f32 for one image (conv bias omitted: cancelled by centering).
        gb = gb_ref[...]                                              # (2, W*c)
        mean = jnp.sum(lane_group_reduce(a, c), axis=0, keepdims=True) * inv_hw
        cen = a - mean
        var = jnp.sum(lane_group_reduce(cen * cen, c), axis=0, keepdims=True) * inv_hw
        y = cen * (jax.lax.rsqrt(var + 1e-5) * gb[0:1, :]) + gb[1:2, :]
        return jnp.where(y > 0, y, 0.01 * y)

    # ---- stage 1: conv -> IN -> LeakyReLU -> VMEM scratch (with halo rows) ---
    x = xp_ref[...]                                   # (NBP, W*Cin) f32
    acc1 = conv3(x, w1_ref)
    zrow = jnp.zeros((1, W * Cmid), jnp.float32)
    for n in range(NB):                               # static unroll, NB is small
        r0 = n * (H + 2)
        y1 = inst_norm_lrelu(acc1[r0:r0 + H, :], gb1_ref, Cmid)
        h1_ref[r0:r0 + 1, :] = zrow                   # top halo row (zero pad)
        h1_ref[r0 + 1:r0 + H + 1, :] = y1
        h1_ref[r0 + H + 1:r0 + H + 2, :] = zrow       # bottom halo row

    # ---- stage 2: conv -> IN -> LeakyReLU -> output --------------------------
    acc2 = conv3(h1_ref[...], w2_ref)
    for n in range(NB):
        r0 = n * (H + 2)
        y2 = inst_norm_lrelu(acc2[r0:r0 + H, :], gb2_ref, Cout)
        o_ref[n * H:(n + 1) * H, :] = y2


# -----------------------------------------------------------------------------
# One-time (hoisted) parameter preparation
# -----------------------------------------------------------------------------
def _banded_tap_weights(w, W):
    """(Cout,Cin,3,3) torch conv weight -> (3, W*Cin, W*Cout) bf16 banded taps.

    Wrow[dh][wi*Cin+ci, wo*Cout+co] = w[co, ci, dh, wi-wo+1] if |wi-wo| <= 1 else 0,
    i.e. the width (dw) shift of the 3x3 kernel is folded into a banded matrix so
    the kernel needs no W-halo and no lane-offset slicing.
    """
    Cin, Cout = int(w.shape[1]), int(w.shape[0])
    wt = jnp.transpose(w.astype(jnp.float32), (2, 3, 1, 0))        # (3,3,Cin,Cout)
    rows = []
    for dh in range(3):
        band = jnp.zeros((W, Cin, W, Cout), jnp.float32)
        for dw in range(3):
            shift = jnp.eye(W, W, k=-(dw - 1), dtype=jnp.float32)  # [wi,wo]=1 iff wi-wo==dw-1
            band = band + shift[:, None, :, None] * wt[dh, dw][None, :, None, :]
        rows.append(band.reshape(W * Cin, W * Cout))
    return jnp.stack(rows, axis=0).astype(jnp.bfloat16)


def prepare_conv_block_params(params, W):
    """Host-side prep, done ONCE (not per forward): banded bf16 taps + tiled affine rows.

    Conv biases b1/b2 are intentionally dropped: a per-channel constant added
    before InstanceNorm is cancelled exactly by the centering step.
    """
    def affine_rows(gamma, beta):
        return jnp.stack([jnp.tile(gamma.astype(jnp.float32), W),
                          jnp.tile(beta.astype(jnp.float32), W)], axis=0)
    return {
        "w1": _banded_tap_weights(params["w1"], W),
        "gb1": affine_rows(params["g1"], params["bt1"]),
        "w2": _banded_tap_weights(params["w2"], W),
        "gb2": affine_rows(params["g2"], params["bt2"]),
    }


def _pick_nb(N, H):
    """Images per grid step: stack rows into the matmul M dim (<=256 rows) while
    keeping the input block sublane-aligned or full-extent."""
    for cand in range(N, 0, -1):
        if N % cand:
            continue
        if cand * (H + 2) - 2 > 256 and cand != 1:
            continue
        if cand == N or (cand * (H + 2)) % 8 == 0:
            return cand
    return N


# -----------------------------------------------------------------------------
# ConvBlock2d forward (NCHW boundary, lane-dense (h, w*c) rows internally)
# -----------------------------------------------------------------------------
def conv_block_2d_forward(x_nchw, prep):
    N, Cin, H, W = x_nchw.shape
    Cmid = prep["gb1"].shape[1] // W
    Cout = prep["gb2"].shape[1] // W
    assert W & (W - 1) == 0, "W must be a power of two (lane roll-reduction)"
    # TODO(synk): for shapes where W*C is not a multiple of 128 the kernel still
    # runs but with partially masked lanes; very large W needs an in-kernel W tiling.

    NB = _pick_nb(N, H)
    G = N // NB
    NBP = NB * (H + 2)

    # NCHW -> lane-dense (h, w*ci) rows with an H halo only (W halo is folded
    # into the banded weights); NB images stacked along rows per grid step.
    x = jnp.transpose(x_nchw.astype(jnp.float32), (0, 2, 3, 1))      # NHWC
    xp = jnp.pad(x, ((0, 0), (1, 1), (0, 0), (0, 0)))                # H halo only
    xp = xp.reshape(N * (H + 2), W * Cin)

    kernel = functools.partial(_fused_convblock_kernel, H, W, Cin, Cmid, Cout, NB)
    out = pl.pallas_call(
        kernel,
        out_shape=jax.ShapeDtypeStruct((N * H, W * Cout), jnp.float32),
        grid=(G,),
        in_specs=[
            pl.BlockSpec((NBP, W * Cin), lambda i: (i, 0)),
            pl.BlockSpec((3, W * Cin, W * Cmid), lambda i: (0, 0, 0)),
            pl.BlockSpec((2, W * Cmid), lambda i: (0, 0)),
            pl.BlockSpec((3, W * Cmid, W * Cout), lambda i: (0, 0, 0)),
            pl.BlockSpec((2, W * Cout), lambda i: (0, 0)),
        ],
        out_specs=pl.BlockSpec((NB * H, W * Cout), lambda i: (i, 0)),
        scratch_shapes=[pltpu.VMEM((NBP, W * Cmid), jnp.float32)],
        compiler_params=pltpu.CompilerParams(
            dimension_semantics=("parallel",),
            vmem_limit_bytes=32 * 1024 * 1024),
    )(xp, prep["w1"], prep["gb1"], prep["w2"], prep["gb2"])

    out = out.reshape(N, H, W, Cout)
    return jnp.transpose(out, (0, 3, 1, 2))                          # NCHW


# -----------------------------------------------------------------------------
# Pure-JAX reference (same bf16 MXU-input convention) for correctness check
# -----------------------------------------------------------------------------
def _reference(x_nchw, params):
    def block(x, w, b, g, bt):
        y = jax.lax.conv_general_dilated(
            x.astype(jnp.bfloat16), w.astype(jnp.bfloat16),
            window_strides=(1, 1), padding="SAME",
            dimension_numbers=("NCHW", "OIHW", "NCHW"),
            preferred_element_type=jnp.float32)
        y = y + b[None, :, None, None]
        mean = jnp.mean(y, axis=(2, 3), keepdims=True)
        var = jnp.mean((y - mean) ** 2, axis=(2, 3), keepdims=True)
        y = (y - mean) * jax.lax.rsqrt(var + 1e-5)
        y = y * g[None, :, None, None] + bt[None, :, None, None]
        return jnp.where(y > 0, y, 0.01 * y)

    y = block(x_nchw.astype(jnp.float32),
              params["w1"], params["b1"], params["g1"], params["bt1"])
    y = block(y, params["w2"], params["b2"], params["g2"], params["bt2"])
    return y


# -----------------------------------------------------------------------------
# Deterministic example run
# -----------------------------------------------------------------------------
if __name__ == "__main__":
    key = jax.random.PRNGKey(0)
    ks = jax.random.split(key, 8)

    N, in_ch, mid_ch, out_ch, H, W = 2, 4, 8, 8, 16, 16
    s = 0.1
    params = {
        "w1":  jax.random.normal(ks[0], (mid_ch, in_ch, 3, 3), jnp.float32) * s,
        "b1":  jax.random.normal(ks[1], (mid_ch,), jnp.float32) * s,
        "g1":  1.0 + 0.1 * jax.random.normal(ks[2], (mid_ch,), jnp.float32),
        "bt1": 0.1 * jax.random.normal(ks[3], (mid_ch,), jnp.float32),
        "w2":  jax.random.normal(ks[4], (out_ch, mid_ch, 3, 3), jnp.float32) * s,
        "b2":  jax.random.normal(ks[5], (out_ch,), jnp.float32) * s,
        "g2":  1.0 + 0.1 * jax.random.normal(ks[6], (out_ch,), jnp.float32),
        "bt2": 0.1 * jax.random.normal(ks[7], (out_ch,), jnp.float32),
    }
    x = jax.random.normal(jax.random.PRNGKey(1), (N, in_ch, H, W), jnp.float32)

    # One-time parameter prep (hoisted out of the forward path).
    prep = prepare_conv_block_params(params, W)

    fwd = jax.jit(conv_block_2d_forward)
    out = jax.block_until_ready(fwd(x, prep))

    assert out.shape == (N, out_ch, H, W)
    assert bool(jnp.all(jnp.isfinite(out)))

    ref = jax.block_until_ready(_reference(x, params))
    max_err = float(jnp.max(jnp.abs(out - ref)))
    assert max_err < 1e-2, f"mismatch vs reference, max_err={max_err}"

    print("KERNEL_OK")
</pallas_src>

<mosaic_0001>
module attributes {stable_mosaic.version = 11 : i64} {
  func.func @_fused_convblock_kernel(%arg0: i32, %arg1: memref<36x64xf32, #tpu.memory_space<vmem>>, %arg2: memref<3x64x128xbf16, #tpu.memory_space<vmem>>, %arg3: memref<2x128xf32, #tpu.memory_space<vmem>>, %arg4: memref<3x128x128xbf16, #tpu.memory_space<vmem>>, %arg5: memref<2x128xf32, #tpu.memory_space<vmem>>, %arg6: memref<32x128xf32, #tpu.memory_space<vmem>>, %arg7: memref<36x128xf32, #tpu.memory_space<vmem>>) attributes {dimension_semantics = [#tpu.dimension_semantics<parallel>], iteration_bounds = array<i64: 1>, scalar_prefetch = 0 : i64, scratch_operands = 1 : i64, tpu.core_type = #tpu.core_type<tc>, window_params = [{transform_indices = @transform_0, window_bounds = array<i64: 36, 64>}, {pipeline_mode = #tpu.pipeline_mode<synchronous>, transform_indices = @transform_1, window_bounds = array<i64: 3, 64, 128>}, {pipeline_mode = #tpu.pipeline_mode<synchronous>, transform_indices = @transform_2, window_bounds = array<i64: 2, 128>}, {pipeline_mode = #tpu.pipeline_mode<synchronous>, transform_indices = @transform_3, window_bounds = array<i64: 3, 128, 128>}, {pipeline_mode = #tpu.pipeline_mode<synchronous>, transform_indices = @transform_4, window_bounds = array<i64: 2, 128>}, {transform_indices = @transform_5, window_bounds = array<i64: 32, 128>}]} {
    %c0 = arith.constant 0 : index
    %c0_0 = arith.constant 0 : index
    %0 = vector.load %arg1[%c0, %c0_0] : memref<36x64xf32, #tpu.memory_space<vmem>>, vector<36x64xf32>
    %1 = vector.extract_strided_slice %0 {offsets = [0, 0], sizes = [34, 64], strides = [1, 1]} : vector<36x64xf32> to vector<34x64xf32>
    %2 = arith.truncf %1 : vector<34x64xf32> to vector<34x64xbf16>
    %c0_1 = arith.constant 0 : index
    %c0_2 = arith.constant 0 : index
    %c0_3 = arith.constant 0 : index
    %3 = vector.load %arg2[%c0_1, %c0_2, %c0_3] : memref<3x64x128xbf16, #tpu.memory_space<vmem>>, vector<1x64x128xbf16>
    %4 = vector.shape_cast %3 : vector<1x64x128xbf16> to vector<64x128xbf16>
    %cst = arith.constant dense<0.000000e+00> : vector<34x128xf32>
    %5 = tpu.matmul %2, %4, %cst {dimension_numbers = #tpu.dot_dimension_numbers<[1], [0], [0], [1], [0, 0, 1, 1], [], []>} : vector<34x64xbf16>, vector<64x128xbf16>, vector<34x128xf32> -> vector<34x128xf32>
    %6 = vector.extract_strided_slice %0 {offsets = [1, 0], sizes = [34, 64], strides = [1, 1]} : vector<36x64xf32> to vector<34x64xf32>
    %7 = arith.truncf %6 : vector<34x64xf32> to vector<34x64xbf16>
    %c1 = arith.constant 1 : index
    %c0_4 = arith.constant 0 : index
    %c0_5 = arith.constant 0 : index
    %8 = vector.load %arg2[%c1, %c0_4, %c0_5] : memref<3x64x128xbf16, #tpu.memory_space<vmem>>, vector<1x64x128xbf16>
    %9 = vector.shape_cast %8 : vector<1x64x128xbf16> to vector<64x128xbf16>
    %cst_6 = arith.constant dense<0.000000e+00> : vector<34x128xf32>
    %10 = tpu.matmul %7, %9, %cst_6 {dimension_numbers = #tpu.dot_dimension_numbers<[1], [0], [0], [1], [0, 0, 1, 1], [], []>} : vector<34x64xbf16>, vector<64x128xbf16>, vector<34x128xf32> -> vector<34x128xf32>
    %11 = arith.addf %5, %10 : vector<34x128xf32>
    %12 = vector.extract_strided_slice %0 {offsets = [2, 0], sizes = [34, 64], strides = [1, 1]} : vector<36x64xf32> to vector<34x64xf32>
    %13 = arith.truncf %12 : vector<34x64xf32> to vector<34x64xbf16>
    %c2 = arith.constant 2 : index
    %c0_7 = arith.constant 0 : index
    %c0_8 = arith.constant 0 : index
    %14 = vector.load %arg2[%c2, %c0_7, %c0_8] : memref<3x64x128xbf16, #tpu.memory_space<vmem>>, vector<1x64x128xbf16>
    %15 = vector.shape_cast %14 : vector<1x64x128xbf16> to vector<64x128xbf16>
    %cst_9 = arith.constant dense<0.000000e+00> : vector<34x128xf32>
    %16 = tpu.matmul %13, %15, %cst_9 {dimension_numbers = #tpu.dot_dimension_numbers<[1], [0], [0], [1], [0, 0, 1, 1], [], []>} : vector<34x64xbf16>, vector<64x128xbf16>, vector<34x128xf32> -> vector<34x128xf32>
    %17 = arith.addf %11, %16 : vector<34x128xf32>
    %cst_10 = arith.constant 0.000000e+00 : f32
    %18 = vector.broadcast %cst_10 : f32 to vector<1x128xf32>
    %19 = vector.extract_strided_slice %17 {offsets = [0, 0], sizes = [16, 128], strides = [1, 1]} : vector<34x128xf32> to vector<16x128xf32>
    %c0_11 = arith.constant 0 : index
    %c0_12 = arith.constant 0 : index
    %20 = vector.load %arg3[%c0_11, %c0_12] : memref<2x128xf32, #tpu.memory_space<vmem>>, vector<2x128xf32>
    %c8_i32 = arith.constant 8 : i32
    %21 = tpu.dynamic_rotate %19 by %c8_i32 dim 1 : vector<16x128xf32>, i32 -> vector<16x128xf32>
    %22 = arith.addf %19, %21 : vector<16x128xf32>
    %c16_i32 = arith.constant 16 : i32
    %23 = tpu.dynamic_rotate %22 by %c16_i32 dim 1 : vector<16x128xf32>, i32 -> vector<16x128xf32>
    %24 = arith.addf %22, %23 : vector<16x128xf32>
    %c32_i32 = arith.constant 32 : i32
    %25 = tpu.dynamic_rotate %24 by %c32_i32 dim 1 : vector<16x128xf32>, i32 -> vector<16x128xf32>
    %26 = arith.addf %24, %25 : vector<16x128xf32>
    %c64_i32 = arith.constant 64 : i32
    %27 = tpu.dynamic_rotate %26 by %c64_i32 dim 1 : vector<16x128xf32>, i32 -> vector<16x128xf32>
    %28 = arith.addf %26, %27 : vector<16x128xf32>
    %cst_13 = arith.constant dense<0.000000e+00> : vector<128xf32>
    %29 = vector.multi_reduction <add>, %28, %cst_13 [0] : vector<16x128xf32> to vector<128xf32>
    %30 = vector.shape_cast %29 : vector<128xf32> to vector<1x128xf32>
    %cst_14 = arith.constant 3.906250e-03 : f32
    %31 = vector.broadcast %cst_14 : f32 to vector<1x128xf32>
    %32 = arith.mulf %30, %31 : vector<1x128xf32>
    %33 = vector.broadcast %32 : vector<1x128xf32> to vector<16x128xf32>
    %34 = arith.subf %19, %33 : vector<16x128xf32>
    %35 = arith.mulf %34, %34 : vector<16x128xf32>
    %c8_i32_15 = arith.constant 8 : i32
    %36 = tpu.dynamic_rotate %35 by %c8_i32_15 dim 1 : vector<16x128xf32>, i32 -> vector<16x128xf32>
    %37 = arith.addf %35, %36 : vector<16x128xf32>
    %c16_i32_16 = arith.constant 16 : i32
    %38 = tpu.dynamic_rotate %37 by %c16_i32_16 dim 1 : vector<16x128xf32>, i32 -> vector<16x128xf32>
    %39 = arith.addf %37, %38 : vector<16x128xf32>
    %c32_i32_17 = arith.constant 32 : i32
    %40 = tpu.dynamic_rotate %39 by %c32_i32_17 dim 1 : vector<16x128xf32>, i32 -> vector<16x128xf32>
    %41 = arith.addf %39, %40 : vector<16x128xf32>
    %c64_i32_18 = arith.constant 64 : i32
    %42 = tpu.dynamic_rotate %41 by %c64_i32_18 dim 1 : vector<16x128xf32>, i32 -> vector<16x128xf32>
    %43 = arith.addf %41, %42 : vector<16x128xf32>
    %cst_19 = arith.constant dense<0.000000e+00> : vector<128xf32>
    %44 = vector.multi_reduction <add>, %43, %cst_19 [0] : vector<16x128xf32> to vector<128xf32>
    %45 = vector.shape_cast %44 : vector<128xf32> to vector<1x128xf32>
    %cst_20 = arith.constant 3.906250e-03 : f32
    %46 = vector.broadcast %cst_20 : f32 to vector<1x128xf32>
    %47 = arith.mulf %45, %46 : vector<1x128xf32>
    %cst_21 = arith.constant 9.99999974E-6 : f32
    %48 = vector.broadcast %cst_21 : f32 to vector<1x128xf32>
    %49 = arith.addf %47, %48 : vector<1x128xf32>
    %50 = math.rsqrt %49 : vector<1x128xf32>
    %51 = vector.extract_strided_slice %20 {offsets = [0, 0], sizes = [1, 128], strides = [1, 1]} : vector<2x128xf32> to vector<1x128xf32>
    %52 = arith.mulf %50, %51 : vector<1x128xf32>
    %53 = vector.broadcast %52 : vector<1x128xf32> to vector<16x128xf32>
    %54 = arith.mulf %34, %53 : vector<16x128xf32>
    %55 = vector.extract_strided_slice %20 {offsets = [1, 0], sizes = [1, 128], strides = [1, 1]} : vector<2x128xf32> to vector<1x128xf32>
    %56 = vector.broadcast %55 : vector<1x128xf32> to vector<16x128xf32>
    %57 = arith.addf %54, %56 : vector<16x128xf32>
    %cst_22 = arith.constant 0.000000e+00 : f32
    %58 = vector.broadcast %cst_22 : f32 to vector<16x128xf32>
    %59 = arith.cmpf ogt, %57, %58 : vector<16x128xf32>
    %cst_23 = arith.constant 0.00999999977 : f32
    %60 = vector.broadcast %cst_23 : f32 to vector<16x128xf32>
    %61 = arith.mulf %60, %57 : vector<16x128xf32>
    %62 = arith.select %59, %57, %61 : vector<16x128xi1>, vector<16x128xf32>
    %c0_24 = arith.constant 0 : index
    %c0_25 = arith.constant 0 : index
    %63 = vector.load %arg7[%c0_24, %c0_25] : memref<36x128xf32, #tpu.memory_space<vmem>>, vector<1x128xf32>
    tpu.vector_store %arg7[%c0_24, %c0_25], %18 {strides = array<i32>} : memref<36x128xf32, #tpu.memory_space<vmem>>, vector<1x128xf32>,
    %c1_26 = arith.constant 1 : index
    %c0_27 = arith.constant 0 : index
    %64 = vector.load %arg7[%c1_26, %c0_27] : memref<36x128xf32, #tpu.memory_space<vmem>>, vector<16x128xf32>
    tpu.vector_store %arg7[%c1_26, %c0_27], %62 {strides = array<i32>} : memref<36x128xf32, #tpu.memory_space<vmem>>, vector<16x128xf32>,
    %c17 = arith.constant 17 : index
    %c0_28 = arith.constant 0 : index
    %65 = vector.load %arg7[%c17, %c0_28] : memref<36x128xf32, #tpu.memory_space<vmem>>, vector<1x128xf32>
    tpu.vector_store %arg7[%c17, %c0_28], %18 {strides = array<i32>} : memref<36x128xf32, #tpu.memory_space<vmem>>, vector<1x128xf32>,
    %66 = vector.extract_strided_slice %17 {offsets = [18, 0], sizes = [16, 128], strides = [1, 1]} : vector<34x128xf32> to vector<16x128xf32>
    %c0_29 = arith.constant 0 : index
    %c0_30 = arith.constant 0 : index
    %67 = vector.load %arg3[%c0_29, %c0_30] : memref<2x128xf32, #tpu.memory_space<vmem>>, vector<2x128xf32>
    %c8_i32_31 = arith.constant 8 : i32
    %68 = tpu.dynamic_rotate %66 by %c8_i32_31 dim 1 : vector<16x128xf32>, i32 -> vector<16x128xf32>
    %69 = arith.addf %66, %68 : vector<16x128xf32>
    %c16_i32_32 = arith.constant 16 : i32
    %70 = tpu.dynamic_rotate %69 by %c16_i32_32 dim 1 : vector<16x128xf32>, i32 -> vector<16x128xf32>
    %71 = arith.addf %69, %70 : vector<16x128xf32>
    %c32_i32_33 = arith.constant 32 : i32
    %72 = tpu.dynamic_rotate %71 by %c32_i32_33 dim 1 : vector<16x128xf32>, i32 -> vector<16x128xf32>
    %73 = arith.addf %71, %72 : vector<16x128xf32>
    %c64_i32_34 = arith.constant 64 : i32
    %74 = tpu.dynamic_rotate %73 by %c64_i32_34 dim 1 : vector<16x128xf32>, i32 -> vector<16x128xf32>
    %75 = arith.addf %73, %74 : vector<16x128xf32>
    %cst_35 = arith.constant dense<0.000000e+00> : vector<128xf32>
    %76 = vector.multi_reduction <add>, %75, %cst_35 [0] : vector<16x128xf32> to vector<128xf32>
    %77 = vector.shape_cast %76 : vector<128xf32> to vector<1x128xf32>
    %cst_36 = arith.constant 3.906250e-03 : f32
    %78 = vector.broadcast %cst_36 : f32 to vector<1x128xf32>
    %79 = arith.mulf %77, %78 : vector<1x128xf32>
    %80 = vector.broadcast %79 : vector<1x128xf32> to vector<16x128xf32>
    %81 = arith.subf %66, %80 : vector<16x128xf32>
    %82 = arith.mulf %81, %81 : vector<16x128xf32>
    %c8_i32_37 = arith.constant 8 : i32
    %83 = tpu.dynamic_rotate %82 by %c8_i32_37 dim 1 : vector<16x128xf32>, i32 -> vector<16x128xf32>
    %84 = arith.addf %82, %83 : vector<16x128xf32>
    %c16_i32_38 = arith.constant 16 : i32
    %85 = tpu.dynamic_rotate %84 by %c16_i32_38 dim 1 : vector<16x128xf32>, i32 -> vector<16x128xf32>
    %86 = arith.addf %84, %85 : vector<16x128xf32>
    %c32_i32_39 = arith.constant 32 : i32
    %87 = tpu.dynamic_rotate %86 by %c32_i32_39 dim 1 : vector<16x128xf32>, i32 -> vector<16x128xf32>
    %88 = arith.addf %86, %87 : vector<16x128xf32>
    %c64_i32_40 = arith.constant 64 : i32
    %89 = tpu.dynamic_rotate %88 by %c64_i32_40 dim 1 : vector<16x128xf32>, i32 -> vector<16x128xf32>
    %90 = arith.addf %88, %89 : vector<16x128xf32>
    %cst_41 = arith.constant dense<0.000000e+00> : vector<128xf32>
    %91 = vector.multi_reduction <add>, %90, %cst_41 [0] : vector<16x128xf32> to vector<128xf32>
    %92 = vector.shape_cast %91 : vector<128xf32> to vector<1x128xf32>
    %cst_42 = arith.constant 3.906250e-03 : f32
    %93 = vector.broadcast %cst_42 : f32 to vector<1x128xf32>
    %94 = arith.mulf %92, %93 : vector<1x128xf32>
    %cst_43 = arith.constant 9.99999974E-6 : f32
    %95 = vector.broadcast %cst_43 : f32 to vector<1x128xf32>
    %96 = arith.addf %94, %95 : vector<1x128xf32>
    %97 = math.rsqrt %96 : vector<1x128xf32>
    %98 = vector.extract_strided_slice %67 {offsets = [0, 0], sizes = [1, 128], strides = [1, 1]} : vector<2x128xf32> to vector<1x128xf32>
    %99 = arith.mulf %97, %98 : vector<1x128xf32>
    %100 = vector.broadcast %99 : vector<1x128xf32> to vector<16x128xf32>
    %101 = arith.mulf %81, %100 : vector<16x128xf32>
    %102 = vector.extract_strided_slice %67 {offsets = [1, 0], sizes = [1, 128], strides = [1, 1]} : vector<2x128xf32> to vector<1x128xf32>
    %103 = vector.broadcast %102 : vector<1x128xf32> to vector<16x128xf32>
    %104 = arith.addf %101, %103 : vector<16x128xf32>
    %cst_44 = arith.constant 0.000000e+00 : f32
    %105 = vector.broadcast %cst_44 : f32 to vector<16x128xf32>
    %106 = arith.cmpf ogt, %104, %105 : vector<16x128xf32>
    %cst_45 = arith.constant 0.00999999977 : f32
    %107 = vector.broadcast %cst_45 : f32 to vector<16x128xf32>
    %108 = arith.mulf %107, %104 : vector<16x128xf32>
    %109 = arith.select %106, %104, %108 : vector<16x128xi1>, vector<16x128xf32>
    %c18 = arith.constant 18 : index
    %c0_46 = arith.constant 0 : index
    %110 = vector.load %arg7[%c18, %c0_46] : memref<36x128xf32, #tpu.memory_space<vmem>>, vector<1x128xf32>
    tpu.vector_store %arg7[%c18, %c0_46], %18 {strides = array<i32>} : memref<36x128xf32, #tpu.memory_space<vmem>>, vector<1x128xf32>,
    %c19 = arith.constant 19 : index
    %c0_47 = arith.constant 0 : index
    %111 = vector.load %arg7[%c19, %c0_47] : memref<36x128xf32, #tpu.memory_space<vmem>>, vector<16x128xf32>
    tpu.vector_store %arg7[%c19, %c0_47], %109 {strides = array<i32>} : memref<36x128xf32, #tpu.memory_space<vmem>>, vector<16x128xf32>,
    %c35 = arith.constant 35 : index
    %c0_48 = arith.constant 0 : index
    %112 = vector.load %arg7[%c35, %c0_48] : memref<36x128xf32, #tpu.memory_space<vmem>>, vector<1x128xf32>
    tpu.vector_store %arg7[%c35, %c0_48], %18 {strides = array<i32>} : memref<36x128xf32, #tpu.memory_space<vmem>>, vector<1x128xf32>,
    %c0_49 = arith.constant 0 : index
    %c0_50 = arith.constant 0 : index
    %113 = vector.load %arg7[%c0_49, %c0_50] : memref<36x128xf32, #tpu.memory_space<vmem>>, vector<36x128xf32>
    %114 = vector.extract_strided_slice %113 {offsets = [0, 0], sizes = [34, 128], strides = [1, 1]} : vector<36x128xf32> to vector<34x128xf32>
    %115 = arith.truncf %114 : vector<34x128xf32> to vector<34x128xbf16>
    %c0_51 = arith.constant 0 : index
    %c0_52 = arith.constant 0 : index
    %c0_53 = arith.constant 0 : index
    %116 = vector.load %arg4[%c0_51, %c0_52, %c0_53] : memref<3x128x128xbf16, #tpu.memory_space<vmem>>, vector<1x128x128xbf16>
    %117 = vector.shape_cast %116 : vector<1x128x128xbf16> to vector<128x128xbf16>
    %cst_54 = arith.constant dense<0.000000e+00> : vector<34x128xf32>
    %118 = tpu.matmul %115, %117, %cst_54 {dimension_numbers = #tpu.dot_dimension_numbers<[1], [0], [0], [1], [0, 0, 1, 1], [], []>} : vector<34x128xbf16>, vector<128x128xbf16>, vector<34x128xf32> -> vector<34x128xf32>
    %119 = vector.extract_strided_slice %113 {offsets = [1, 0], sizes = [34, 128], strides = [1, 1]} : vector<36x128xf32> to vector<34x128xf32>
    %120 = arith.truncf %119 : vector<34x128xf32> to vector<34x128xbf16>
    %c1_55 = arith.constant 1 : index
    %c0_56 = arith.constant 0 : index
    %c0_57 = arith.constant 0 : index
    %121 = vector.load %arg4[%c1_55, %c0_56, %c0_57] : memref<3x128x128xbf16, #tpu.memory_space<vmem>>, vector<1x128x128xbf16>
    %122 = vector.shape_cast %121 : vector<1x128x128xbf16> to vector<128x128xbf16>
    %cst_58 = arith.constant dense<0.000000e+00> : vector<34x128xf32>
    %123 = tpu.matmul %120, %122, %cst_58 {dimension_numbers = #tpu.dot_dimension_numbers<[1], [0], [0], [1], [0, 0, 1, 1], [], []>} : vector<34x128xbf16>, vector<128x128xbf16>, vector<34x128xf32> -> vector<34x128xf32>
    %124 = arith.addf %118, %123 : vector<34x128xf32>
    %125 = vector.extract_strided_slice %113 {offsets = [2, 0], sizes = [34, 128], strides = [1, 1]} : vector<36x128xf32> to vector<34x128xf32>
    %126 = arith.truncf %125 : vector<34x128xf32> to vector<34x128xbf16>
    %c2_59 = arith.constant 2 : index
    %c0_60 = arith.constant 0 : index
    %c0_61 = arith.constant 0 : index
    %127 = vector.load %arg4[%c2_59, %c0_60, %c0_61] : memref<3x128x128xbf16, #tpu.memory_space<vmem>>, vector<1x128x128xbf16>
    %128 = vector.shape_cast %127 : vector<1x128x128xbf16> to vector<128x128xbf16>
    %cst_62 = arith.constant dense<0.000000e+00> : vector<34x128xf32>
    %129 = tpu.matmul %126, %128, %cst_62 {dimension_numbers = #tpu.dot_dimension_numbers<[1], [0], [0], [1], [0, 0, 1, 1], [], []>} : vector<34x128xbf16>, vector<128x128xbf16>, vector<34x128xf32> -> vector<34x128xf32>
    %130 = arith.addf %124, %129 : vector<34x128xf32>
    %131 = vector.extract_strided_slice %130 {offsets = [0, 0], sizes = [16, 128], strides = [1, 1]} : vector<34x128xf32> to vector<16x128xf32>
    %c0_63 = arith.constant 0 : index
    %c0_64 = arith.constant 0 : index
    %132 = vector.load %arg5[%c0_63, %c0_64] : memref<2x128xf32, #tpu.memory_space<vmem>>, vector<2x128xf32>
    %c8_i32_65 = arith.constant 8 : i32
    %133 = tpu.dynamic_rotate %131 by %c8_i32_65 dim 1 : vector<16x128xf32>, i32 -> vector<16x128xf32>
    %134 = arith.addf %131, %133 : vector<16x128xf32>
    %c16_i32_66 = arith.constant 16 : i32
    %135 = tpu.dynamic_rotate %134 by %c16_i32_66 dim 1 : vector<16x128xf32>, i32 -> vector<16x128xf32>
    %136 = arith.addf %134, %135 : vector<16x128xf32>
    %c32_i32_67 = arith.constant 32 : i32
    %137 = tpu.dynamic_rotate %136 by %c32_i32_67 dim 1 : vector<16x128xf32>, i32 -> vector<16x128xf32>
    %138 = arith.addf %136, %137 : vector<16x128xf32>
    %c64_i32_68 = arith.constant 64 : i32
    %139 = tpu.dynamic_rotate %138 by %c64_i32_68 dim 1 : vector<16x128xf32>, i32 -> vector<16x128xf32>
    %140 = arith.addf %138, %139 : vector<16x128xf32>
    %cst_69 = arith.constant dense<0.000000e+00> : vector<128xf32>
    %141 = vector.multi_reduction <add>, %140, %cst_69 [0] : vector<16x128xf32> to vector<128xf32>
    %142 = vector.shape_cast %141 : vector<128xf32> to vector<1x128xf32>
    %cst_70 = arith.constant 3.906250e-03 : f32
    %143 = vector.broadcast %cst_70 : f32 to vector<1x128xf32>
    %144 = arith.mulf %142, %143 : vector<1x128xf32>
    %145 = vector.broadcast %144 : vector<1x128xf32> to vector<16x128xf32>
    %146 = arith.subf %131, %145 : vector<16x128xf32>
    %147 = arith.mulf %146, %146 : vector<16x128xf32>
    %c8_i32_71 = arith.constant 8 : i32
    %148 = tpu.dynamic_rotate %147 by %c8_i32_71 dim 1 : vector<16x128xf32>, i32 -> vector<16x128xf32>
    %149 = arith.addf %147, %148 : vector<16x128xf32>
    %c16_i32_72 = arith.constant 16 : i32
    %150 = tpu.dynamic_rotate %149 by %c16_i32_72 dim 1 : vector<16x128xf32>, i32 -> vector<16x128xf32>
    %151 = arith.addf %149, %150 : vector<16x128xf32>
    %c32_i32_73 = arith.constant 32 : i32
    %152 = tpu.dynamic_rotate %151 by %c32_i32_73 dim 1 : vector<16x128xf32>, i32 -> vector<16x128xf32>
    %153 = arith.addf %151, %152 : vector<16x128xf32>
    %c64_i32_74 = arith.constant 64 : i32
    %154 = tpu.dynamic_rotate %153 by %c64_i32_74 dim 1 : vector<16x128xf32>, i32 -> vector<16x128xf32>
    %155 = arith.addf %153, %154 : vector<16x128xf32>
    %cst_75 = arith.constant dense<0.000000e+00> : vector<128xf32>
    %156 = vector.multi_reduction <add>, %155, %cst_75 [0] : vector<16x128xf32> to vector<128xf32>
    %157 = vector.shape_cast %156 : vector<128xf32> to vector<1x128xf32>
    %cst_76 = arith.constant 3.906250e-03 : f32
    %158 = vector.broadcast %cst_76 : f32 to vector<1x128xf32>
    %159 = arith.mulf %157, %158 : vector<1x128xf32>
    %cst_77 = arith.constant 9.99999974E-6 : f32
    %160 = vector.broadcast %cst_77 : f32 to vector<1x128xf32>
    %161 = arith.addf %159, %160 : vector<1x128xf32>
    %162 = math.rsqrt %161 : vector<1x128xf32>
    %163 = vector.extract_strided_slice %132 {offsets = [0, 0], sizes = [1, 128], strides = [1, 1]} : vector<2x128xf32> to vector<1x128xf32>
    %164 = arith.mulf %162, %163 : vector<1x128xf32>
    %165 = vector.broadcast %164 : vector<1x128xf32> to vector<16x128xf32>
    %166 = arith.mulf %146, %165 : vector<16x128xf32>
    %167 = vector.extract_strided_slice %132 {offsets = [1, 0], sizes = [1, 128], strides = [1, 1]} : vector<2x128xf32> to vector<1x128xf32>
    %168 = vector.broadcast %167 : vector<1x128xf32> to vector<16x128xf32>
    %169 = arith.addf %166, %168 : vector<16x128xf32>
    %cst_78 = arith.constant 0.000000e+00 : f32
    %170 = vector.broadcast %cst_78 : f32 to vector<16x128xf32>
    %171 = arith.cmpf ogt, %169, %170 : vector<16x128xf32>
    %cst_79 = arith.constant 0.00999999977 : f32
    %172 = vector.broadcast %cst_79 : f32 to vector<16x128xf32>
    %173 = arith.mulf %172, %169 : vector<16x128xf32>
    %174 = arith.select %171, %169, %173 : vector<16x128xi1>, vector<16x128xf32>
    %c0_80 = arith.constant 0 : index
    %c0_81 = arith.constant 0 : index
    %175 = vector.load %arg6[%c0_80, %c0_81] : memref<32x128xf32, #tpu.memory_space<vmem>>, vector<16x128xf32>
    tpu.vector_store %arg6[%c0_80, %c0_81], %174 {strides = array<i32>} : memref<32x128xf32, #tpu.memory_space<vmem>>, vector<16x128xf32>,
    %176 = vector.extract_strided_slice %130 {offsets = [18, 0], sizes = [16, 128], strides = [1, 1]} : vector<34x128xf32> to vector<16x128xf32>
    %c0_82 = arith.constant 0 : index
    %c0_83 = arith.constant 0 : index
    %177 = vector.load %arg5[%c0_82, %c0_83] : memref<2x128xf32, #tpu.memory_space<vmem>>, vector<2x128xf32>
    %c8_i32_84 = arith.constant 8 : i32
    %178 = tpu.dynamic_rotate %176 by %c8_i32_84 dim 1 : vector<16x128xf32>, i32 -> vector<16x128xf32>
    %179 = arith.addf %176, %178 : vector<16x128xf32>
    %c16_i32_85 = arith.constant 16 : i32
    %180 = tpu.dynamic_rotate %179 by %c16_i32_85 dim 1 : vector<16x128xf32>, i32 -> vector<16x128xf32>
    %181 = arith.addf %179, %180 : vector<16x128xf32>
    %c32_i32_86 = arith.constant 32 : i32
    %182 = tpu.dynamic_rotate %181 by %c32_i32_86 dim 1 : vector<16x128xf32>, i32 -> vector<16x128xf32>
    %183 = arith.addf %181, %182 : vector<16x128xf32>
    %c64_i32_87 = arith.constant 64 : i32
    %184 = tpu.dynamic_rotate %183 by %c64_i32_87 dim 1 : vector<16x128xf32>, i32 -> vector<16x128xf32>
    %185 = arith.addf %183, %184 : vector<16x128xf32>
    %cst_88 = arith.constant dense<0.000000e+00> : vector<128xf32>
    %186 = vector.multi_reduction <add>, %185, %cst_88 [0] : vector<16x128xf32> to vector<128xf32>
    %187 = vector.shape_cast %186 : vector<128xf32> to vector<1x128xf32>
    %cst_89 = arith.constant 3.906250e-03 : f32
    %188 = vector.broadcast %cst_89 : f32 to vector<1x128xf32>
    %189 = arith.mulf %187, %188 : vector<1x128xf32>
    %190 = vector.broadcast %189 : vector<1x128xf32> to vector<16x128xf32>
    %191 = arith.subf %176, %190 : vector<16x128xf32>
    %192 = arith.mulf %191, %191 : vector<16x128xf32>
    %c8_i32_90 = arith.constant 8 : i32
    %193 = tpu.dynamic_rotate %192 by %c8_i32_90 dim 1 : vector<16x128xf32>, i32 -> vector<16x128xf32>
    %194 = arith.addf %192, %193 : vector<16x128xf32>
    %c16_i32_91 = arith.constant 16 : i32
    %195 = tpu.dynamic_rotate %194 by %c16_i32_91 dim 1 : vector<16x128xf32>, i32 -> vector<16x128xf32>
    %196 = arith.addf %194, %195 : vector<16x128xf32>
    %c32_i32_92 = arith.constant 32 : i32
    %197 = tpu.dynamic_rotate %196 by %c32_i32_92 dim 1 : vector<16x128xf32>, i32 -> vector<16x128xf32>
    %198 = arith.addf %196, %197 : vector<16x128xf32>
    %c64_i32_93 = arith.constant 64 : i32
    %199 = tpu.dynamic_rotate %198 by %c64_i32_93 dim 1 : vector<16x128xf32>, i32 -> vector<16x128xf32>
    %200 = arith.addf %198, %199 : vector<16x128xf32>
    %cst_94 = arith.constant dense<0.000000e+00> : vector<128xf32>
    %201 = vector.multi_reduction <add>, %200, %cst_94 [0] : vector<16x128xf32> to vector<128xf32>
    %202 = vector.shape_cast %201 : vector<128xf32> to vector<1x128xf32>
    %cst_95 = arith.constant 3.906250e-03 : f32
    %203 = vector.broadcast %cst_95 : f32 to vector<1x128xf32>
    %204 = arith.mulf %202, %203 : vector<1x128xf32>
    %cst_96 = arith.constant 9.99999974E-6 : f32
    %205 = vector.broadcast %cst_96 : f32 to vector<1x128xf32>
    %206 = arith.addf %204, %205 : vector<1x128xf32>
    %207 = math.rsqrt %206 : vector<1x128xf32>
    %208 = vector.extract_strided_slice %177 {offsets = [0, 0], sizes = [1, 128], strides = [1, 1]} : vector<2x128xf32> to vector<1x128xf32>
    %209 = arith.mulf %207, %208 : vector<1x128xf32>
    %210 = vector.broadcast %209 : vector<1x128xf32> to vector<16x128xf32>
    %211 = arith.mulf %191, %210 : vector<16x128xf32>
    %212 = vector.extract_strided_slice %177 {offsets = [1, 0], sizes = [1, 128], strides = [1, 1]} : vector<2x128xf32> to vector<1x128xf32>
    %213 = vector.broadcast %212 : vector<1x128xf32> to vector<16x128xf32>
    %214 = arith.addf %211, %213 : vector<16x128xf32>
    %cst_97 = arith.constant 0.000000e+00 : f32
    %215 = vector.broadcast %cst_97 : f32 to vector<16x128xf32>
    %216 = arith.cmpf ogt, %214, %215 : vector<16x128xf32>
    %cst_98 = arith.constant 0.00999999977 : f32
    %217 = vector.broadcast %cst_98 : f32 to vector<16x128xf32>
    %218 = arith.mulf %217, %214 : vector<16x128xf32>
    %219 = arith.select %216, %214, %218 : vector<16x128xi1>, vector<16x128xf32>
    %c16 = arith.constant 16 : index
    %c0_99 = arith.constant 0 : index
    %220 = vector.load %arg6[%c16, %c0_99] : memref<32x128xf32, #tpu.memory_space<vmem>>, vector<16x128xf32>
    tpu.vector_store %arg6[%c16, %c0_99], %219 {strides = array<i32>} : memref<32x128xf32, #tpu.memory_space<vmem>>, vector<16x128xf32>,
    return
  }
  func.func @transform_0(%arg0: i32) -> (i32, i32) {
    %c0_i32 = arith.constant 0 : i32
    %c0_i32_0 = arith.constant 0 : i32
    return %arg0, %c0_i32 : i32, i32
  }
  func.func @transform_1(%arg0: i32) -> (i32, i32, i32) {
    %c0_i32 = arith.constant 0 : i32
    %c0_i32_0 = arith.constant 0 : i32
    %c0_i32_1 = arith.constant 0 : i32
    %c0_i32_2 = arith.constant 0 : i32
    return %c0_i32, %c0_i32_0, %c0_i32_1 : i32, i32, i32
  }
  func.func @transform_2(%arg0: i32) -> (i32, i32) {
    %c0_i32 = arith.constant 0 : i32
    %c0_i32_0 = arith.constant 0 : i32
    %c0_i32_1 = arith.constant 0 : i32
    return %c0_i32, %c0_i32_0 : i32, i32
  }
  func.func @transform_3(%arg0: i32) -> (i32, i32, i32) {
    %c0_i32 = arith.constant 0 : i32
    %c0_i32_0 = arith.constant 0 : i32
    %c0_i32_1 = arith.constant 0 : i32
    %c0_i32_2 = arith.constant 0 : i32
    return %c0_i32, %c0_i32_0, %c0_i32_1 : i32, i32, i32
  }
  func.func @transform_4(%arg0: i32) -> (i32, i32) {
    %c0_i32 = arith.constant 0 : i32
    %c0_i32_0 = arith.constant 0 : i32
    %c0_i32_1 = arith.constant 0 : i32
    return %c0_i32, %c0_i32_0 : i32, i32
  }
  func.func @transform_5(%arg0: i32) -> (i32, i32) {
    %c0_i32 = arith.constant 0 : i32
    %c0_i32_0 = arith.constant 0 : i32
    return %arg0, %c0_i32 : i32, i32
  }
}

</mosaic_0001>

<llo_original>
// kernel: conv_block_2d_forward.1
$region0: #{conv_block_2d_forward.1}
  #allocation0 [shape = 'u32[]', space=smem, size = 0x4, offset = 0x4, fixed_abs, tag = 'smem constant byte address 0x4 - core index']
  #allocation1 [shape = 'u32[144,128]{1,0:T(1,128)}', space=vmem, size = 0x12000, scoped, tag = 'internal scratch']
  #allocation2 [shape = 'f32[36,128]{1,0:T(8,128)}', space=vmem, size = 0x5000, scoped, tag = 'scratch operand']
  %s0 = inlined_call_operand.vmem [shape: f32[36,64], index: 0, kind: input, shape index: {}]
  %s1 = inlined_call_operand.vmem [shape: bf16[3,64,128], index: 1, kind: input, shape index: {}]
  %s2 = inlined_call_operand.vmem [shape: f32[2,128], index: 2, kind: input, shape index: {}]
  %s3 = inlined_call_operand.vmem [shape: bf16[3,128,128], index: 3, kind: input, shape index: {}]
  %s4 = inlined_call_operand.vmem [shape: f32[2,128], index: 4, kind: input, shape index: {}]
  %s5 = inlined_call_operand.vmem [shape: f32[32,128], index: 5, kind: output, shape index: {}]
  %s6 = sld [smem:[#allocation0]]
  $region30: #{conv_block_2d_forward.1} parent=0
    _
  %s8 = ssub.s32 1, %s6
  %s9 = scalar_select 0, %s8, %s6
  // Predicated region
  $region2: #{conv_block_2d_forward.1} parent=0 // pred_check
    _
  $region3: #{conv_block_2d_forward.1} parent=0 // pred_check_branch
    %11 = sbr.rel (0) target = $region5
  $region4: #{conv_block_2d_forward.1} parent=0 // pred_region
    _
  $region5: #{conv_block_2d_forward.1} parent=0 // pred_fallthru
    _
  // Predicated region
  $region6: #{conv_block_2d_forward.1} parent=0 // pred_check
    _
  $region7: #{conv_block_2d_forward.1} parent=0 // pred_check_branch
    %13 = sbr.rel (0) target = $region9
  $region8: #{conv_block_2d_forward.1} parent=0 // pred_region
    _
  $region9: #{conv_block_2d_forward.1} parent=0 // pred_fallthru
    _
  // Predicated region
  $region10: #{conv_block_2d_forward.1} parent=0 // pred_check
    _
  $region11: #{conv_block_2d_forward.1} parent=0 // pred_check_branch
    %15 = sbr.rel (0) target = $region13
  $region12: #{conv_block_2d_forward.1} parent=0 // pred_region
    _
  $region13: #{conv_block_2d_forward.1} parent=0 // pred_fallthru
    _
  // Predicated region
  $region14: #{conv_block_2d_forward.1} parent=0 // pred_check
    _
  $region15: #{conv_block_2d_forward.1} parent=0 // pred_check_branch
    %17 = sbr.rel (0) target = $region17
  $region16: #{conv_block_2d_forward.1} parent=0 // pred_region
    _
  $region17: #{conv_block_2d_forward.1} parent=0 // pred_fallthru
    _
  // Predicated region
  $region18: #{conv_block_2d_forward.1} parent=0 // pred_check
    _
  $region19: #{conv_block_2d_forward.1} parent=0 // pred_check_branch
    %19 = sbr.rel (0) target = $region21
  $region20: #{conv_block_2d_forward.1} parent=0 // pred_region
    _
  $region21: #{conv_block_2d_forward.1} parent=0 // pred_fallthru
    _
  %v21 = vld [vmem:[%s0] sm:$0xff]
  %v22 = vld [vmem:[%s0 + $0x8] sm:$0xff]
  %v23 = vld [vmem:[%s0 + $0x10] sm:$0xff]
  %v24 = vld [vmem:[%s0 + $0x18] sm:$0xff]
  %v25 = vld [vmem:[%s0 + $0x20] sm:$0xf]
  %v26 = vpack.c.bf16 %v22, %v21
  %v27 = vpack.c.bf16 %v24, %v23
  %v28 = vpack.c.bf16 %v25, %v25
  %v29 = vld [vmem:[%s1] sm:$0xf]
  %v30 = vld [vmem:[%s1 + $0x4] sm:$0xf]
  %v31 = vld [vmem:[%s1 + $0x8] sm:$0xf]
  %v32 = vld [vmem:[%s1 + $0xc] sm:$0xf]
  %v33 = vld [vmem:[%s1 + $0x10] sm:$0xf]
  %v34 = vld [vmem:[%s1 + $0x14] sm:$0xf]
  %v35 = vld [vmem:[%s1 + $0x18] sm:$0xf]
  %v36 = vld [vmem:[%s1 + $0x1c] sm:$0xf]
  %s37 = scalar_lea.vmem %s1, 32
  %v38 = vld [vmem:[%s37] sm:$0xf]
  %v39 = vld [vmem:[%s37 + $0x4] sm:$0xf]
  %v40 = vld [vmem:[%s37 + $0x8] sm:$0xf]
  %v41 = vld [vmem:[%s37 + $0xc] sm:$0xf]
  %v42 = vld [vmem:[%s37 + $0x10] sm:$0xf]
  %v43 = vld [vmem:[%s37 + $0x14] sm:$0xf]
  %v44 = vld [vmem:[%s37 + $0x18] sm:$0xf]
  %v45 = vld [vmem:[%s37 + $0x1c] sm:$0xf]
  %vm46 = vsmask.f32 7424
  %v48 = vshrl.u32 %v26, 16
  %v50 = vshll.u32 %v26, 16
  %v52 = vrot.slane %v50, 1
  %v53 = vor.u32 %v48, %v52
  %v55 = vshll.u32 %v27, 16
  %v57 = vrot.slane %v55, 1
  %v58 = vsel %vm46, %v53, %v57
  %v59 = vshrl.u32 %v27, 16
  %v61 = vor.u32 %v59, %v57
  %v63 = vshll.u32 %v28, 16
  %v65 = vrot.slane %v63, 1
  %v66 = vsel %vm46, %v61, %v65
  %v67 = vshrl.u32 %v28, 16
  %v69 = vor.u32 %v67, %v65
  %v78 = vunpack.c.l.b16 %v38
  %v79 = vunpack.c.l.b16 %v39
  %v80 = vunpack.c.l.b16 %v40
  %v81 = vunpack.c.l.b16 %v41
  %v82 = vunpack.c.l.b16 %v42
  %v83 = vunpack.c.l.b16 %v43
  %v84 = vunpack.c.l.b16 %v44
  %v85 = vunpack.c.l.b16 %v45
  %v86 = vpack.c.b16 %v79, %v78
  %v87 = vpack.c.b16 %v81, %v80
  %v88 = vpack.c.b16 %v83, %v82
  %v89 = vpack.c.b16 %v85, %v84
  %vm94 = vcmask 523264
  %v96 = vsel %vm94, %v58, 0
  %v99 = vsel %vm94, %v66, 0
  %v102 = vsel %vm94, %v69, 0
  %104 = vmatprep.subr.bf16.mxu0 0
  %105 = vmatpush1.bf16.msra.mxu0 %v86
  %106 = vmatprep.subr.bf16.mxu0 0
  %107 = vmatpush1.bf16.msra.mxu0 %v87
  %108 = vmatprep.subr.bf16.mxu0 0
  %109 = vmatpush1.bf16.msra.mxu0 %v88
  %110 = vmatprep.subr.bf16.mxu0 0
  %111 = vmatpush1.bf16.msra.mxu0 %v89
  %112 = vmatprep.subr.bf16.mxu0 0
  %113 = vmatpush1.bf16.msra.mxu0 0
  %114 = vmatprep.subr.bf16.mxu0 0
  %115 = vmatpush1.bf16.msra.mxu0 0
  %116 = vmatprep.subr.bf16.mxu0 0
  %117 = vmatpush1.bf16.msra.mxu0 0
  %118 = vmatprep.subr.bf16.mxu0 0
  %119 = vmatpush1.bf16.msra.mxu0 0
  %120 = vmatprep.subr.bf16.mxu0 0
  %121 = vmatpush1.bf16.msra.mxu0 0
  %122 = vmatprep.subr.bf16.mxu0 0
  %123 = vmatpush1.bf16.msra.mxu0 0
  %124 = vmatprep.subr.bf16.mxu0 0
  %125 = vmatpush1.bf16.msra.mxu0 0
  %126 = vmatprep.subr.bf16.mxu0 0
  %127 = vmatpush1.bf16.msra.mxu0 0
  %128 = vmatprep.subr.bf16.mxu0 0
  %129 = vmatpush1.bf16.msra.mxu0 0
  %130 = vmatprep.subr.bf16.mxu0 0
  %131 = vmatpush1.bf16.msra.mxu0 0
  %132 = vmatprep.subr.bf16.mxu0 0
  %133 = vmatpush1.bf16.msra.mxu0 0
  %134 = vmatprep.subr.bf16.mxu0 0
  %135 = vmatpush1.bf16.msra.mxu0 0
  %136 = vmatprep.mubr.bf16.mxu0 0
  %137 = vmatmul.mubr.bf16.gmra.mrb[0].mxu0 %v96
  %v138 = vpop.f32.mrb[0].mxu0
  %v139 = vadd.f32 0.0, %v138
  %v140 = vpop.f32.mrb[0].mxu0
  %v141 = vpop.f32.mrb[0].mxu0
  %v142 = vadd.f32 0.0, %v141
  %v143 = vpop.f32.mrb[0].mxu0
  %144 = vmatprep.mubr.bf16.mxu0 0
  %145 = vmatmul.mubr.bf16.gmra.mrb[0].mxu0 %v99
  %v146 = vpop.f32.mrb[0].mxu0
  %v147 = vadd.f32 0.0, %v146
  %v148 = vpop.f32.mrb[0].mxu0
  %v149 = vpop.f32.mrb[0].mxu0
  %v150 = vadd.f32 0.0, %v149
  %v151 = vpop.f32.mrb[0].mxu0
  %152 = vmatprep.mubr.bf16.mxu0 0
  %153 = vmatmul.mubr.bf16.gmra.mrb[0].mxu0 %v102
  %v154 = vpop.f32.mrb[0].mxu0
  %v155 = vadd.f32 0.0, %v154
  %v156 = vpop.f32.mrb[0].mxu0
  %v157 = vpop.f32.mrb[0].mxu0
  %v158 = vpop.f32.mrb[0].mxu0
  %159 = vdwg.mxu0
  %v168 = vunpack.c.l.b16 %v29
  %v169 = vunpack.c.l.b16 %v30
  %v170 = vunpack.c.l.b16 %v31
  %v171 = vunpack.c.l.b16 %v32
  %v172 = vunpack.c.l.b16 %v33
  %v173 = vunpack.c.l.b16 %v34
  %v174 = vunpack.c.l.b16 %v35
  %v175 = vunpack.c.l.b16 %v36
  %v176 = vpack.c.b16 %v169, %v168
  %v177 = vpack.c.b16 %v171, %v170
  %v178 = vpack.c.b16 %v173, %v172
  %v179 = vpack.c.b16 %v175, %v174
  %v184 = vsel %vm94, %v26, 0
  %v186 = vsel %vm94, %v27, 0
  %v188 = vsel %vm94, %v28, 0
  %190 = vmatprep.subr.bf16.mxu0 0
  %191 = vmatpush1.bf16.msra.mxu0 %v176
  %192 = vmatprep.subr.bf16.mxu0 0
  %193 = vmatpush1.bf16.msra.mxu0 %v177
  %194 = vmatprep.subr.bf16.mxu0 0
  %195 = vmatpush1.bf16.msra.mxu0 %v178
  %196 = vmatprep.subr.bf16.mxu0 0
  %197 = vmatpush1.bf16.msra.mxu0 %v179
  %198 = vmatprep.subr.bf16.mxu0 0
  %199 = vmatpush1.bf16.msra.mxu0 0
  %200 = vmatprep.subr.bf16.mxu0 0
  %201 = vmatpush1.bf16.msra.mxu0 0
  %202 = vmatprep.subr.bf16.mxu0 0
  %203 = vmatpush1.bf16.msra.mxu0 0
  %204 = vmatprep.subr.bf16.mxu0 0
  %205 = vmatpush1.bf16.msra.mxu0 0
  %206 = vmatprep.subr.bf16.mxu0 0
  %207 = vmatpush1.bf16.msra.mxu0 0
  %208 = vmatprep.subr.bf16.mxu0 0
  %209 = vmatpush1.bf16.msra.mxu0 0
  %210 = vmatprep.subr.bf16.mxu0 0
  %211 = vmatpush1.bf16.msra.mxu0 0
  %212 = vmatprep.subr.bf16.mxu0 0
  %213 = vmatpush1.bf16.msra.mxu0 0
  %214 = vmatprep.subr.bf16.mxu0 0
  %215 = vmatpush1.bf16.msra.mxu0 0
  %216 = vmatprep.subr.bf16.mxu0 0
  %217 = vmatpush1.bf16.msra.mxu0 0
  %218 = vmatprep.subr.bf16.mxu0 0
  %219 = vmatpush1.bf16.msra.mxu0 0
  %220 = vmatprep.subr.bf16.mxu0 0
  %221 = vmatpush1.bf16.msra.mxu0 0
  %222 = vmatprep.mubr.bf16.mxu0 0
  %223 = vmatmul.mubr.bf16.gmra.mrb[0].mxu0 %v184
  %v224 = vpop.f32.mrb[0].mxu0
  %v225 = vadd.f32 %v139, %v224
  %v226 = vpop.f32.mrb[0].mxu0
  %v227 = vpop.f32.mrb[0].mxu0
  %v228 = vadd.f32 %v142, %v227
  %v229 = vpop.f32.mrb[0].mxu0
  %230 = vmatprep.mubr.bf16.mxu0 0
  %231 = vmatmul.mubr.bf16.gmra.mrb[0].mxu0 %v186
  %v232 = vpop.f32.mrb[0].mxu0
  %v233 = vadd.f32 %v147, %v232
  %v234 = vpop.f32.mrb[0].mxu0
  %v235 = vpop.f32.mrb[0].mxu0
  %v236 = vadd.f32 %v150, %v235
  %v237 = vpop.f32.mrb[0].mxu0
  %238 = vmatprep.mubr.bf16.mxu0 0
  %239 = vmatmul.mubr.bf16.gmra.mrb[0].mxu0 %v188
  %v240 = vpop.f32.mrb[0].mxu0
  %v241 = vadd.f32 %v155, %v240
  %v242 = vpop.f32.mrb[0].mxu0
  %v243 = vpop.f32.mrb[0].mxu0
  %v244 = vpop.f32.mrb[0].mxu0
  %245 = vdwg.mxu0
  %s246 = scalar_lea.vmem %s1, 64
  %v247 = vld [vmem:[%s246] sm:$0xf]
  %v248 = vld [vmem:[%s246 + $0x4] sm:$0xf]
  %v249 = vld [vmem:[%s246 + $0x8] sm:$0xf]
  %v250 = vld [vmem:[%s246 + $0xc] sm:$0xf]
  %v251 = vld [vmem:[%s246 + $0x10] sm:$0xf]
  %v252 = vld [vmem:[%s246 + $0x14] sm:$0xf]
  %v253 = vld [vmem:[%s246 + $0x18] sm:$0xf]
  %v254 = vld [vmem:[%s246 + $0x1c] sm:$0xf]
  %vm258 = vcmask 1046528
  %v259 = vrot.slane %v26, 1
  %v260 = vrot.slane %v27, 1
  %v261 = vsel %vm258, %v259, %v260
  %v262 = vrot.slane %v28, 1
  %v263 = vsel %vm258, %v260, %v262
  %v272 = vunpack.c.l.b16 %v247
  %v273 = vunpack.c.l.b16 %v248
  %v274 = vunpack.c.l.b16 %v249
  %v275 = vunpack.c.l.b16 %v250
  %v276 = vunpack.c.l.b16 %v251
  %v277 = vunpack.c.l.b16 %v252
  %v278 = vunpack.c.l.b16 %v253
  %v279 = vunpack.c.l.b16 %v254
  %v280 = vpack.c.b16 %v273, %v272
  %v281 = vpack.c.b16 %v275, %v274
  %v282 = vpack.c.b16 %v277, %v276
  %v283 = vpack.c.b16 %v279, %v278
  %v289 = vsel %vm94, %v261, 0
  %v292 = vsel %vm94, %v263, 0
  %v295 = vsel %vm94, %v262, 0
  %297 = vmatprep.subr.bf16.mxu0 0
  %298 = vmatpush1.bf16.msra.mxu0 %v280
  %299 = vmatprep.subr.bf16.mxu0 0
  %300 = vmatpush1.bf16.msra.mxu0 %v281
  %301 = vmatprep.subr.bf16.mxu0 0
  %302 = vmatpush1.bf16.msra.mxu0 %v282
  %303 = vmatprep.subr.bf16.mxu0 0
  %304 = vmatpush1.bf16.msra.mxu0 %v283
  %305 = vmatprep.subr.bf16.mxu0 0
  %306 = vmatpush1.bf16.msra.mxu0 0
  %307 = vmatprep.subr.bf16.mxu0 0
  %308 = vmatpush1.bf16.msra.mxu0 0
  %309 = vmatprep.subr.bf16.mxu0 0
  %310 = vmatpush1.bf16.msra.mxu0 0
  %311 = vmatprep.subr.bf16.mxu0 0
  %312 = vmatpush1.bf16.msra.mxu0 0
  %313 = vmatprep.subr.bf16.mxu0 0
  %314 = vmatpush1.bf16.msra.mxu0 0
  %315 = vmatprep.subr.bf16.mxu0 0
  %316 = vmatpush1.bf16.msra.mxu0 0
  %317 = vmatprep.subr.bf16.mxu0 0
  %318 = vmatpush1.bf16.msra.mxu0 0
  %319 = vmatprep.subr.bf16.mxu0 0
  %320 = vmatpush1.bf16.msra.mxu0 0
  %321 = vmatprep.subr.bf16.mxu0 0
  %322 = vmatpush1.bf16.msra.mxu0 0
  %323 = vmatprep.subr.bf16.mxu0 0
  %324 = vmatpush1.bf16.msra.mxu0 0
  %325 = vmatprep.subr.bf16.mxu0 0
  %326 = vmatpush1.bf16.msra.mxu0 0
  %327 = vmatprep.subr.bf16.mxu0 0
  %328 = vmatpush1.bf16.msra.mxu0 0
  %329 = vmatprep.mubr.bf16.mxu0 0
  %330 = vmatmul.mubr.bf16.gmra.mrb[0].mxu0 %v289
  %v331 = vpop.f32.mrb[0].mxu0
  %v332 = vadd.f32 0.0, %v331
  %v333 = vpop.f32.mrb[0].mxu0
  %v334 = vpop.f32.mrb[0].mxu0
  %v335 = vadd.f32 0.0, %v334
  %v336 = vpop.f32.mrb[0].mxu0
  %337 = vmatprep.mubr.bf16.mxu0 0
  %338 = vmatmul.mubr.bf16.gmra.mrb[0].mxu0 %v292
  %v339 = vpop.f32.mrb[0].mxu0
  %v340 = vadd.f32 0.0, %v339
  %v341 = vpop.f32.mrb[0].mxu0
  %v342 = vpop.f32.mrb[0].mxu0
  %v343 = vadd.f32 0.0, %v342
  %v344 = vpop.f32.mrb[0].mxu0
  %345 = vmatprep.mubr.bf16.mxu0 0
  %346 = vmatmul.mubr.bf16.gmra.mrb[0].mxu0 %v295
  %v347 = vpop.f32.mrb[0].mxu0
  %v348 = vadd.f32 0.0, %v347
  %v349 = vpop.f32.mrb[0].mxu0
  %v350 = vpop.f32.mrb[0].mxu0
  %v351 = vpop.f32.mrb[0].mxu0
  %352 = vdwg.mxu0
  %v353 = vadd.f32 %v225, %v332
  %v354 = vadd.f32 %v228, %v335
  %v355 = vadd.f32 %v233, %v340
  %v356 = vadd.f32 %v236, %v343
  %v357 = vadd.f32 %v241, %v348
  %v358 = vld [vmem:[%s2] sm:$0x3]
  %359 = vrot.lane.b32.xlu0 %v353, 8
  %v360 = vpop.permute.xlu0 %359
  %361 = vrot.lane.b32.xlu0 %v354, 8
  %v362 = vpop.permute.xlu0 %361
  %v363 = vadd.f32 %v353, %v360
  %v364 = vadd.f32 %v354, %v362
  %365 = vrot.lane.b32.xlu0 %v363, 16
  %v366 = vpop.permute.xlu0 %365
  %367 = vrot.lane.b32.xlu0 %v364, 16
  %v368 = vpop.permute.xlu0 %367
  %v369 = vadd.f32 %v363, %v366
  %v370 = vadd.f32 %v364, %v368
  %371 = vrot.lane.b32.xlu0 %v369, 32
  %v372 = vpop.permute.xlu0 %371
  %373 = vrot.lane.b32.xlu0 %v370, 32
  %v374 = vpop.permute.xlu0 %373
  %v375 = vadd.f32 %v369, %v372
  %v376 = vadd.f32 %v370, %v374
  %377 = vrot.lane.b32.xlu0 %v375, 64
  %v378 = vpop.permute.xlu0 %377
  %379 = vrot.lane.b32.xlu0 %v376, 64
  %v380 = vpop.permute.xlu0 %379
  %v381 = vadd.f32 %v375, %v378
  %v382 = vadd.f32 %v376, %v380
  %v383 = vadd.f32 %v381, %v382
  %v384 = vrot.slane %v383, 4
  %v385 = vadd.f32 %v383, %v384
  %v386 = vrot.slane %v385, 2
  %v387 = vadd.f32 %v385, %v386
  %v388 = vrot.slane %v387, 1
  %v389 = vadd.f32 %v387, %v388
  %v390 = vmul.f32 %v389, 0.00390625
  %v391 = vsub.f32 %v353, %v390
  %v392 = vsub.f32 %v354, %v390
  %v393 = vmul.f32 %v391, %v391
  %v394 = vmul.f32 %v392, %v392
  %395 = vrot.lane.b32.xlu0 %v393, 8
  %v396 = vpop.permute.xlu0 %395
  %397 = vrot.lane.b32.xlu0 %v394, 8
  %v398 = vpop.permute.xlu0 %397
  %v399 = vadd.f32 %v393, %v396
  %v400 = vadd.f32 %v394, %v398
  %401 = vrot.lane.b32.xlu0 %v399, 16
  %v402 = vpop.permute.xlu0 %401
  %403 = vrot.lane.b32.xlu0 %v400, 16
  %v404 = vpop.permute.xlu0 %403
  %v405 = vadd.f32 %v399, %v402
  %v406 = vadd.f32 %v400, %v404
  %407 = vrot.lane.b32.xlu0 %v405, 32
  %v408 = vpop.permute.xlu0 %407
  %409 = vrot.lane.b32.xlu0 %v406, 32
  %v410 = vpop.permute.xlu0 %409
  %v411 = vadd.f32 %v405, %v408
  %v412 = vadd.f32 %v406, %v410
  %413 = vrot.lane.b32.xlu0 %v411, 64
  %v414 = vpop.permute.xlu0 %413
  %415 = vrot.lane.b32.xlu0 %v412, 64
  %v416 = vpop.permute.xlu0 %415
  %v417 = vadd.f32 %v411, %v414
  %v418 = vadd.f32 %v412, %v416
  %v419 = vadd.f32 %v417, %v418
  %v420 = vrot.slane %v419, 4
  %v421 = vadd.f32 %v419, %v420
  %v422 = vrot.slane %v421, 2
  %v423 = vadd.f32 %v421, %v422
  %v424 = vrot.slane %v423, 1
  %v425 = vadd.f32 %v423, %v424
  %v426 = vmul.f32 %v425, 0.00390625
  %v427 = vadd.f32 %v426, 1e-05
  %v428 = vrsqrt.pop %v427
  %v429 = vmul.f32 %v428, %v358
  %v430 = vlaneseq
  %v431 = vshrl.u32 %v430, 7
  %v432 = vsub.s32 0, %v431
  %v433 = vrot.slane %v429, %v432
  %v434 = vmul.f32 %v391, %v433
  %v435 = vmul.f32 %v392, %v433
  %v436 = vlaneseq
  %v437 = vshrl.u32 %v436, 7
  %v438 = vsub.s32 1, %v437
  %v439 = vrot.slane %v358, %v438
  %v440 = vadd.f32 %v434, %v439
  %v441 = vadd.f32 %v435, %v439
  %vm442 = vcmp.gt.f32.partialorder %v440, 0.0
  %vm443 = vcmp.gt.f32.partialorder %v441, 0.0
  %v444 = vmul.f32 %v440, 0.01
  %v445 = vmul.f32 %v441, 0.01
  %v446 = vsel %vm442, %v440, %v444
  %v447 = vsel %vm443, %v441, %v445
  %448 = vst [vmem:[#allocation2] sm:$0x1] 0.0
  %449 = vst [vmem:[#allocation2 + $0x1] sm:$0xff] %v446
  %450 = vst [vmem:[#allocation2 + $0x9] sm:$0xff] %v447
  %451 = vst [vmem:[#allocation2 + $0x11] sm:$0x1] 0.0
  %v452 = vld [vmem:[%s2] sm:$0x3]
  %vm456 = vcmask 1045504
  %v457 = vrot.slane %v355, 2
  %v458 = vrot.slane %v356, 2
  %v459 = vsel %vm456, %v457, %v458
  %v460 = vrot.slane %v357, 2
  %v461 = vsel %vm456, %v458, %v460
  %464 = vrot.lane.b32.xlu0 %v459, 8
  %v465 = vpop.permute.xlu0 %464
  %466 = vrot.lane.b32.xlu0 %v461, 8
  %v467 = vpop.permute.xlu0 %466
  %vm470 = vcmask 1041408
  %v471 = vrot.slane %v465, 6
  %v472 = vrot.slane %v467, 6
  %v473 = vsel %vm470, %v471, %v472
  %v477 = vadd.f32 %v355, %v471
  %v478 = vadd.f32 %v356, %v473
  %v479 = vadd.f32 %v357, %v472
  %v483 = vrot.slane %v477, 2
  %v484 = vrot.slane %v478, 2
  %v485 = vsel %vm456, %v483, %v484
  %v486 = vrot.slane %v479, 2
  %v487 = vsel %vm456, %v484, %v486
  %490 = vrot.lane.b32.xlu0 %v485, 16
  %v491 = vpop.permute.xlu0 %490
  %492 = vrot.lane.b32.xlu0 %v487, 16
  %v493 = vpop.permute.xlu0 %492
  %v496 = vrot.slane %v491, 6
  %v497 = vrot.slane %v493, 6
  %v498 = vsel %vm470, %v496, %v497
  %v502 = vadd.f32 %v477, %v496
  %v503 = vadd.f32 %v478, %v498
  %v504 = vadd.f32 %v479, %v497
  %v508 = vrot.slane %v502, 2
  %v509 = vrot.slane %v503, 2
  %v510 = vsel %vm456, %v508, %v509
  %v511 = vrot.slane %v504, 2
  %v512 = vsel %vm456, %v509, %v511
  %515 = vrot.lane.b32.xlu0 %v510, 32
  %v516 = vpop.permute.xlu0 %515
  %517 = vrot.lane.b32.xlu0 %v512, 32
  %v518 = vpop.permute.xlu0 %517
  %v521 = vrot.slane %v516, 6
  %v522 = vrot.slane %v518, 6
  %v523 = vsel %vm470, %v521, %v522
  %v527 = vadd.f32 %v502, %v521
  %v528 = vadd.f32 %v503, %v523
  %v529 = vadd.f32 %v504, %v522
  %v533 = vrot.slane %v527, 2
  %v534 = vrot.slane %v528, 2
  %v535 = vsel %vm456, %v533, %v534
  %v536 = vrot.slane %v529, 2
  %v537 = vsel %vm456, %v534, %v536
  %540 = vrot.lane.b32.xlu0 %v535, 64
  %v541 = vpop.permute.xlu0 %540
  %542 = vrot.lane.b32.xlu0 %v537, 64
  %v543 = vpop.permute.xlu0 %542
  %v546 = vrot.slane %v541, 6
  %v547 = vrot.slane %v543, 6
  %v548 = vsel %vm470, %v546, %v547
  %v552 = vadd.f32 %v527, %v546
  %v553 = vadd.f32 %v528, %v548
  %v554 = vadd.f32 %v529, %v547
  %v558 = vrot.slane %v552, 2
  %v559 = vrot.slane %v553, 2
  %v560 = vsel %vm456, %v558, %v559
  %v561 = vrot.slane %v554, 2
  %v562 = vsel %vm456, %v559, %v561
  %v565 = vadd.f32 %v560, %v562
  %v566 = vrot.slane %v565, 4
  %v567 = vadd.f32 %v565, %v566
  %v568 = vrot.slane %v567, 2
  %v569 = vadd.f32 %v567, %v568
  %v570 = vrot.slane %v569, 1
  %v571 = vadd.f32 %v569, %v570
  %v572 = vmul.f32 %v571, 0.00390625
  %v573 = vsub.f32 %v355, %v572
  %v574 = vsub.f32 %v356, %v572
  %v575 = vsub.f32 %v357, %v572
  %v576 = vmul.f32 %v573, %v573
  %v577 = vmul.f32 %v574, %v574
  %v578 = vmul.f32 %v575, %v575
  %v582 = vrot.slane %v576, 2
  %v583 = vrot.slane %v577, 2
  %v584 = vsel %vm456, %v582, %v583
  %v585 = vrot.slane %v578, 2
  %v586 = vsel %vm456, %v583, %v585
  %589 = vrot.lane.b32.xlu0 %v584, 8
  %v590 = vpop.permute.xlu0 %589
  %591 = vrot.lane.b32.xlu0 %v586, 8
  %v592 = vpop.permute.xlu0 %591
  %v595 = vrot.slane %v590, 6
  %v596 = vrot.slane %v592, 6
  %v597 = vsel %vm470, %v595, %v596
  %v601 = vadd.f32 %v576, %v595
  %v602 = vadd.f32 %v577, %v597
  %v603 = vadd.f32 %v578, %v596
  %v607 = vrot.slane %v601, 2
  %v608 = vrot.slane %v602, 2
  %v609 = vsel %vm456, %v607, %v608
  %v610 = vrot.slane %v603, 2
  %v611 = vsel %vm456, %v608, %v610
  %614 = vrot.lane.b32.xlu0 %v609, 16
  %v615 = vpop.permute.xlu0 %614
  %616 = vrot.lane.b32.xlu0 %v611, 16
  %v617 = vpop.permute.xlu0 %616
  %v620 = vrot.slane %v615, 6
  %v621 = vrot.slane %v617, 6
  %v622 = vsel %vm470, %v620, %v621
  %v626 = vadd.f32 %v601, %v620
  %v627 = vadd.f32 %v602, %v622
  %v628 = vadd.f32 %v603, %v621
  %v632 = vrot.slane %v626, 2
  %v633 = vrot.slane %v627, 2
  %v634 = vsel %vm456, %v632, %v633
  %v635 = vrot.slane %v628, 2
  %v636 = vsel %vm456, %v633, %v635
  %639 = vrot.lane.b32.xlu0 %v634, 32
  %v640 = vpop.permute.xlu0 %639
  %641 = vrot.lane.b32.xlu0 %v636, 32
  %v642 = vpop.permute.xlu0 %641
  %v645 = vrot.slane %v640, 6
  %v646 = vrot.slane %v642, 6
  %v647 = vsel %vm470, %v645, %v646
  %v651 = vadd.f32 %v626, %v645
  %v652 = vadd.f32 %v627, %v647
  %v653 = vadd.f32 %v628, %v646
  %v657 = vrot.slane %v651, 2
  %v658 = vrot.slane %v652, 2
  %v659 = vsel %vm456, %v657, %v658
  %v660 = vrot.slane %v653, 2
  %v661 = vsel %vm456, %v658, %v660
  %664 = vrot.lane.b32.xlu0 %v659, 64
  %v665 = vpop.permute.xlu0 %664
  %666 = vrot.lane.b32.xlu0 %v661, 64
  %v667 = vpop.permute.xlu0 %666
  %v670 = vrot.slane %v665, 6
  %v671 = vrot.slane %v667, 6
  %v672 = vsel %vm470, %v670, %v671
  %v676 = vadd.f32 %v651, %v670
  %v677 = vadd.f32 %v652, %v672
  %v678 = vadd.f32 %v653, %v671
  %v682 = vrot.slane %v676, 2
  %v683 = vrot.slane %v677, 2
  %v684 = vsel %vm456, %v682, %v683
  %v685 = vrot.slane %v678, 2
  %v686 = vsel %vm456, %v683, %v685
  %v689 = vadd.f32 %v684, %v686
  %v690 = vrot.slane %v689, 4
  %v691 = vadd.f32 %v689, %v690
  %v692 = vrot.slane %v691, 2
  %v693 = vadd.f32 %v691, %v692
  %v694 = vrot.slane %v693, 1
  %v695 = vadd.f32 %v693, %v694
  %v696 = vmul.f32 %v695, 0.00390625
  %v697 = vadd.f32 %v696, 1e-05
  %v698 = vrsqrt.pop %v697
  %v699 = vmul.f32 %v698, %v452
  %v700 = vlaneseq
  %v701 = vshrl.u32 %v700, 7
  %v702 = vsub.s32 0, %v701
  %v703 = vrot.slane %v699, %v702
  %v704 = vmul.f32 %v573, %v703
  %v705 = vmul.f32 %v574, %v703
  %v706 = vmul.f32 %v575, %v703
  %v707 = vlaneseq
  %v708 = vshrl.u32 %v707, 7
  %v709 = vsub.s32 1, %v708
  %v710 = vrot.slane %v452, %v709
  %v711 = vadd.f32 %v704, %v710
  %v712 = vadd.f32 %v705, %v710
  %v713 = vadd.f32 %v706, %v710
  %vm714 = vcmp.gt.f32.partialorder %v711, 0.0
  %vm715 = vcmp.gt.f32.partialorder %v712, 0.0
  %vm716 = vcmp.gt.f32.partialorder %v713, 0.0
  %v717 = vmul.f32 %v711, 0.01
  %v718 = vmul.f32 %v712, 0.01
  %v719 = vmul.f32 %v713, 0.01
  %v720 = vsel %vm714, %v711, %v717
  %v721 = vsel %vm715, %v712, %v718
  %v722 = vsel %vm716, %v713, %v719
  %723 = vst [vmem:[#allocation2 + $0x12] sm:$0x1] 0.0
  %724 = vst [vmem:[#allocation2 + $0x11] sm:$0xfc] %v720
  %725 = vst [vmem:[#allocation2 + $0x19] sm:$0xff] %v721
  %726 = vst [vmem:[#allocation2 + $0x21] sm:$0x3] %v722
  %727 = vst [vmem:[#allocation2 + $0x23] sm:$0x1] 0.0
  %v728 = vld [vmem:[#allocation2] sm:$0xff]
  %v729 = vld [vmem:[#allocation2 + $0x8] sm:$0xff]
  %v730 = vld [vmem:[#allocation2 + $0x10] sm:$0xff]
  %v731 = vld [vmem:[#allocation2 + $0x18] sm:$0xff]
  %v732 = vld [vmem:[#allocation2 + $0x20] sm:$0xf]
  %v733 = vpack.c.bf16 %v729, %v728
  %v734 = vpack.c.bf16 %v731, %v730
  %v735 = vpack.c.bf16 %v732, %v732
  %v736 = vld [vmem:[%s3] sm:$0xf]
  %v737 = vld [vmem:[%s3 + $0x4] sm:$0xf]
  %v738 = vld [vmem:[%s3 + $0x8] sm:$0xf]
  %v739 = vld [vmem:[%s3 + $0xc] sm:$0xf]
  %v740 = vld [vmem:[%s3 + $0x10] sm:$0xf]
  %v741 = vld [vmem:[%s3 + $0x14] sm:$0xf]
  %v742 = vld [vmem:[%s3 + $0x18] sm:$0xf]
  %v743 = vld [vmem:[%s3 + $0x1c] sm:$0xf]
  %v744 = vld [vmem:[%s3 + $0x20] sm:$0xf]
  %v745 = vld [vmem:[%s3 + $0x24] sm:$0xf]
  %v746 = vld [vmem:[%s3 + $0x28] sm:$0xf]
  %v747 = vld [vmem:[%s3 + $0x2c] sm:$0xf]
  %v748 = vld [vmem:[%s3 + $0x30] sm:$0xf]
  %v749 = vld [vmem:[%s3 + $0x34] sm:$0xf]
  %v750 = vld [vmem:[%s3 + $0x38] sm:$0xf]
  %v751 = vld [vmem:[%s3 + $0x3c] sm:$0xf]
  %s752 = scalar_lea.vmem %s3, 64
  %v753 = vld [vmem:[%s752] sm:$0xf]
  %v754 = vld [vmem:[%s752 + $0x4] sm:$0xf]
  %v755 = vld [vmem:[%s752 + $0x8] sm:$0xf]
  %v756 = vld [vmem:[%s752 + $0xc] sm:$0xf]
  %v757 = vld [vmem:[%s752 + $0x10] sm:$0xf]
  %v758 = vld [vmem:[%s752 + $0x14] sm:$0xf]
  %v759 = vld [vmem:[%s752 + $0x18] sm:$0xf]
  %v760 = vld [vmem:[%s752 + $0x1c] sm:$0xf]
  %v761 = vld [vmem:[%s752 + $0x20] sm:$0xf]
  %v762 = vld [vmem:[%s752 + $0x24] sm:$0xf]
  %v763 = vld [vmem:[%s752 + $0x28] sm:$0xf]
  %v764 = vld [vmem:[%s752 + $0x2c] sm:$0xf]
  %v765 = vld [vmem:[%s752 + $0x30] sm:$0xf]
  %v766 = vld [vmem:[%s752 + $0x34] sm:$0xf]
  %v767 = vld [vmem:[%s752 + $0x38] sm:$0xf]
  %v768 = vld [vmem:[%s752 + $0x3c] sm:$0xf]
  %v770 = vshrl.u32 %v733, 16
  %v772 = vshll.u32 %v733, 16
  %v774 = vrot.slane %v772, 1
  %v775 = vor.u32 %v770, %v774
  %v777 = vshll.u32 %v734, 16
  %v779 = vrot.slane %v777, 1
  %v780 = vsel %vm46, %v775, %v779
  %v781 = vshrl.u32 %v734, 16
  %v783 = vor.u32 %v781, %v779
  %v785 = vshll.u32 %v735, 16
  %v787 = vrot.slane %v785, 1
  %v788 = vsel %vm46, %v783, %v787
  %v789 = vshrl.u32 %v735, 16
  %v791 = vor.u32 %v789, %v787
  %v811 = vunpack.c.l.b16 %v753
  %v812 = vunpack.c.l.b16 %v754
  %v813 = vunpack.c.l.b16 %v755
  %v814 = vunpack.c.l.b16 %v756
  %v815 = vunpack.c.l.b16 %v757
  %v816 = vunpack.c.l.b16 %v758
  %v817 = vunpack.c.l.b16 %v759
  %v818 = vunpack.c.l.b16 %v760
  %v819 = vunpack.c.l.b16 %v761
  %v820 = vunpack.c.l.b16 %v762
  %v821 = vunpack.c.l.b16 %v763
  %v822 = vunpack.c.l.b16 %v764
  %v823 = vunpack.c.l.b16 %v765
  %v824 = vunpack.c.l.b16 %v766
  %v825 = vunpack.c.l.b16 %v767
  %v826 = vunpack.c.l.b16 %v768
  %v827 = vpack.c.b16 %v812, %v811
  %v828 = vpack.c.b16 %v814, %v813
  %v829 = vpack.c.b16 %v816, %v815
  %v830 = vpack.c.b16 %v818, %v817
  %v831 = vpack.c.b16 %v820, %v819
  %v832 = vpack.c.b16 %v822, %v821
  %v833 = vpack.c.b16 %v824, %v823
  %v834 = vpack.c.b16 %v826, %v825
  %843 = vmatprep.subr.bf16.mxu0 0
  %844 = vmatpush1.bf16.msra.mxu0 %v827
  %845 = vmatprep.subr.bf16.mxu0 0
  %846 = vmatpush1.bf16.msra.mxu0 %v828
  %847 = vmatprep.subr.bf16.mxu0 0
  %848 = vmatpush1.bf16.msra.mxu0 %v829
  %849 = vmatprep.subr.bf16.mxu0 0
  %850 = vmatpush1.bf16.msra.mxu0 %v830
  %851 = vmatprep.subr.bf16.mxu0 0
  %852 = vmatpush1.bf16.msra.mxu0 %v831
  %853 = vmatprep.subr.bf16.mxu0 0
  %854 = vmatpush1.bf16.msra.mxu0 %v832
  %855 = vmatprep.subr.bf16.mxu0 0
  %856 = vmatpush1.bf16.msra.mxu0 %v833
  %857 = vmatprep.subr.bf16.mxu0 0
  %858 = vmatpush1.bf16.msra.mxu0 %v834
  %859 = vmatprep.subr.bf16.mxu0 0
  %860 = vmatpush1.bf16.msra.mxu0 0
  %861 = vmatprep.subr.bf16.mxu0 0
  %862 = vmatpush1.bf16.msra.mxu0 0
  %863 = vmatprep.subr.bf16.mxu0 0
  %864 = vmatpush1.bf16.msra.mxu0 0
  %865 = vmatprep.subr.bf16.mxu0 0
  %866 = vmatpush1.bf16.msra.mxu0 0
  %867 = vmatprep.subr.bf16.mxu0 0
  %868 = vmatpush1.bf16.msra.mxu0 0
  %869 = vmatprep.subr.bf16.mxu0 0
  %870 = vmatpush1.bf16.msra.mxu0 0
  %871 = vmatprep.subr.bf16.mxu0 0
  %872 = vmatpush1.bf16.msra.mxu0 0
  %873 = vmatprep.subr.bf16.mxu0 0
  %874 = vmatpush1.bf16.msra.mxu0 0
  %875 = vmatprep.mubr.bf16.mxu0 0
  %876 = vmatmul.mubr.bf16.gmra.mrb[0].mxu0 %v780
  %v877 = vpop.f32.mrb[0].mxu0
  %v878 = vadd.f32 0.0, %v877
  %v879 = vpop.f32.mrb[0].mxu0
  %v880 = vpop.f32.mrb[0].mxu0
  %v881 = vadd.f32 0.0, %v880
  %v882 = vpop.f32.mrb[0].mxu0
  %883 = vmatprep.mubr.bf16.mxu0 0
  %884 = vmatmul.mubr.bf16.gmra.mrb[0].mxu0 %v788
  %v885 = vpop.f32.mrb[0].mxu0
  %v886 = vadd.f32 0.0, %v885
  %v887 = vpop.f32.mrb[0].mxu0
  %v888 = vpop.f32.mrb[0].mxu0
  %v889 = vadd.f32 0.0, %v888
  %v890 = vpop.f32.mrb[0].mxu0
  %891 = vmatprep.mubr.bf16.mxu0 0
  %892 = vmatmul.mubr.bf16.gmra.mrb[0].mxu0 %v791
  %v893 = vpop.f32.mrb[0].mxu0
  %v894 = vadd.f32 0.0, %v893
  %v895 = vpop.f32.mrb[0].mxu0
  %v896 = vpop.f32.mrb[0].mxu0
  %v897 = vpop.f32.mrb[0].mxu0
  %898 = vdwg.mxu0
  %v915 = vunpack.c.l.b16 %v736
  %v916 = vunpack.c.l.b16 %v737
  %v917 = vunpack.c.l.b16 %v738
  %v918 = vunpack.c.l.b16 %v739
  %v919 = vunpack.c.l.b16 %v740
  %v920 = vunpack.c.l.b16 %v741
  %v921 = vunpack.c.l.b16 %v742
  %v922 = vunpack.c.l.b16 %v743
  %v923 = vunpack.c.l.b16 %v744
  %v924 = vunpack.c.l.b16 %v745
  %v925 = vunpack.c.l.b16 %v746
  %v926 = vunpack.c.l.b16 %v747
  %v927 = vunpack.c.l.b16 %v748
  %v928 = vunpack.c.l.b16 %v749
  %v929 = vunpack.c.l.b16 %v750
  %v930 = vunpack.c.l.b16 %v751
  %v931 = vpack.c.b16 %v916, %v915
  %v932 = vpack.c.b16 %v918, %v917
  %v933 = vpack.c.b16 %v920, %v919
  %v934 = vpack.c.b16 %v922, %v921
  %v935 = vpack.c.b16 %v924, %v923
  %v936 = vpack.c.b16 %v926, %v925
  %v937 = vpack.c.b16 %v928, %v927
  %v938 = vpack.c.b16 %v930, %v929
  %947 = vmatprep.subr.bf16.mxu0 0
  %948 = vmatpush1.bf16.msra.mxu0 %v931
  %949 = vmatprep.subr.bf16.mxu0 0
  %950 = vmatpush1.bf16.msra.mxu0 %v932
  %951 = vmatprep.subr.bf16.mxu0 0
  %952 = vmatpush1.bf16.msra.mxu0 %v933
  %953 = vmatprep.subr.bf16.mxu0 0
  %954 = vmatpush1.bf16.msra.mxu0 %v934
  %955 = vmatprep.subr.bf16.mxu0 0
  %956 = vmatpush1.bf16.msra.mxu0 %v935
  %957 = vmatprep.subr.bf16.mxu0 0
  %958 = vmatpush1.bf16.msra.mxu0 %v936
  %959 = vmatprep.subr.bf16.mxu0 0
  %960 = vmatpush1.bf16.msra.mxu0 %v937
  %961 = vmatprep.subr.bf16.mxu0 0
  %962 = vmatpush1.bf16.msra.mxu0 %v938
  %963 = vmatprep.subr.bf16.mxu0 0
  %964 = vmatpush1.bf16.msra.mxu0 0
  %965 = vmatprep.subr.bf16.mxu0 0
  %966 = vmatpush1.bf16.msra.mxu0 0
  %967 = vmatprep.subr.bf16.mxu0 0
  %968 = vmatpush1.bf16.msra.mxu0 0
  %969 = vmatprep.subr.bf16.mxu0 0
  %970 = vmatpush1.bf16.msra.mxu0 0
  %971 = vmatprep.subr.bf16.mxu0 0
  %972 = vmatpush1.bf16.msra.mxu0 0
  %973 = vmatprep.subr.bf16.mxu0 0
  %974 = vmatpush1.bf16.msra.mxu0 0
  %975 = vmatprep.subr.bf16.mxu0 0
  %976 = vmatpush1.bf16.msra.mxu0 0
  %977 = vmatprep.subr.bf16.mxu0 0
  %978 = vmatpush1.bf16.msra.mxu0 0
  %979 = vmatprep.mubr.bf16.mxu0 0
  %980 = vmatmul.mubr.bf16.gmra.mrb[0].mxu0 %v733
  %v981 = vpop.f32.mrb[0].mxu0
  %v982 = vadd.f32 %v878, %v981
  %v983 = vpop.f32.mrb[0].mxu0
  %v984 = vpop.f32.mrb[0].mxu0
  %v985 = vadd.f32 %v881, %v984
  %v986 = vpop.f32.mrb[0].mxu0
  %987 = vmatprep.mubr.bf16.mxu0 0
  %988 = vmatmul.mubr.bf16.gmra.mrb[0].mxu0 %v734
  %v989 = vpop.f32.mrb[0].mxu0
  %v990 = vadd.f32 %v886, %v989
  %v991 = vpop.f32.mrb[0].mxu0
  %v992 = vpop.f32.mrb[0].mxu0
  %v993 = vadd.f32 %v889, %v992
  %v994 = vpop.f32.mrb[0].mxu0
  %995 = vmatprep.mubr.bf16.mxu0 0
  %996 = vmatmul.mubr.bf16.gmra.mrb[0].mxu0 %v735
  %v997 = vpop.f32.mrb[0].mxu0
  %v998 = vadd.f32 %v894, %v997
  %v999 = vpop.f32.mrb[0].mxu0
  %v1000 = vpop.f32.mrb[0].mxu0
  %v1001 = vpop.f32.mrb[0].mxu0
  %1002 = vdwg.mxu0
  %s1003 = scalar_lea.vmem %s3, 128
  %v1004 = vld [vmem:[%s1003] sm:$0xf]
  %v1005 = vld [vmem:[%s1003 + $0x4] sm:$0xf]
  %v1006 = vld [vmem:[%s1003 + $0x8] sm:$0xf]
  %v1007 = vld [vmem:[%s1003 + $0xc] sm:$0xf]
  %v1008 = vld [vmem:[%s1003 + $0x10] sm:$0xf]
  %v1009 = vld [vmem:[%s1003 + $0x14] sm:$0xf]
  %v1010 = vld [vmem:[%s1003 + $0x18] sm:$0xf]
  %v1011 = vld [vmem:[%s1003 + $0x1c] sm:$0xf]
  %v1012 = vld [vmem:[%s1003 + $0x20] sm:$0xf]
  %v1013 = vld [vmem:[%s1003 + $0x24] sm:$0xf]
  %v1014 = vld [vmem:[%s1003 + $0x28] sm:$0xf]
  %v1015 = vld [vmem:[%s1003 + $0x2c] sm:$0xf]
  %v1016 = vld [vmem:[%s1003 + $0x30] sm:$0xf]
  %v1017 = vld [vmem:[%s1003 + $0x34] sm:$0xf]
  %v1018 = vld [vmem:[%s1003 + $0x38] sm:$0xf]
  %v1019 = vld [vmem:[%s1003 + $0x3c] sm:$0xf]
  %v1023 = vrot.slane %v733, 1
  %v1024 = vrot.slane %v734, 1
  %v1025 = vsel %vm258, %v1023, %v1024
  %v1026 = vrot.slane %v735, 1
  %v1027 = vsel %vm258, %v1024, %v1026
  %v1047 = vunpack.c.l.b16 %v1004
  %v1048 = vunpack.c.l.b16 %v1005
  %v1049 = vunpack.c.l.b16 %v1006
  %v1050 = vunpack.c.l.b16 %v1007
  %v1051 = vunpack.c.l.b16 %v1008
  %v1052 = vunpack.c.l.b16 %v1009
  %v1053 = vunpack.c.l.b16 %v1010
  %v1054 = vunpack.c.l.b16 %v1011
  %v1055 = vunpack.c.l.b16 %v1012
  %v1056 = vunpack.c.l.b16 %v1013
  %v1057 = vunpack.c.l.b16 %v1014
  %v1058 = vunpack.c.l.b16 %v1015
  %v1059 = vunpack.c.l.b16 %v1016
  %v1060 = vunpack.c.l.b16 %v1017
  %v1061 = vunpack.c.l.b16 %v1018
  %v1062 = vunpack.c.l.b16 %v1019
  %v1063 = vpack.c.b16 %v1048, %v1047
  %v1064 = vpack.c.b16 %v1050, %v1049
  %v1065 = vpack.c.b16 %v1052, %v1051
  %v1066 = vpack.c.b16 %v1054, %v1053
  %v1067 = vpack.c.b16 %v1056, %v1055
  %v1068 = vpack.c.b16 %v1058, %v1057
  %v1069 = vpack.c.b16 %v1060, %v1059
  %v1070 = vpack.c.b16 %v1062, %v1061
  %1079 = vmatprep.subr.bf16.mxu0 0
  %1080 = vmatpush1.bf16.msra.mxu0 %v1063
  %1081 = vmatprep.subr.bf16.mxu0 0
  %1082 = vmatpush1.bf16.msra.mxu0 %v1064
  %1083 = vmatprep.subr.bf16.mxu0 0
  %1084 = vmatpush1.bf16.msra.mxu0 %v1065
  %1085 = vmatprep.subr.bf16.mxu0 0
  %1086 = vmatpush1.bf16.msra.mxu0 %v1066
  %1087 = vmatprep.subr.bf16.mxu0 0
  %1088 = vmatpush1.bf16.msra.mxu0 %v1067
  %1089 = vmatprep.subr.bf16.mxu0 0
  %1090 = vmatpush1.bf16.msra.mxu0 %v1068
  %1091 = vmatprep.subr.bf16.mxu0 0
  %1092 = vmatpush1.bf16.msra.mxu0 %v1069
  %1093 = vmatprep.subr.bf16.mxu0 0
  %1094 = vmatpush1.bf16.msra.mxu0 %v1070
  %1095 = vmatprep.subr.bf16.mxu0 0
  %1096 = vmatpush1.bf16.msra.mxu0 0
  %1097 = vmatprep.subr.bf16.mxu0 0
  %1098 = vmatpush1.bf16.msra.mxu0 0
  %1099 = vmatprep.subr.bf16.mxu0 0
  %1100 = vmatpush1.bf16.msra.mxu0 0
  %1101 = vmatprep.subr.bf16.mxu0 0
  %1102 = vmatpush1.bf16.msra.mxu0 0
  %1103 = vmatprep.subr.bf16.mxu0 0
  %1104 = vmatpush1.bf16.msra.mxu0 0
  %1105 = vmatprep.subr.bf16.mxu0 0
  %1106 = vmatpush1.bf16.msra.mxu0 0
  %1107 = vmatprep.subr.bf16.mxu0 0
  %1108 = vmatpush1.bf16.msra.mxu0 0
  %1109 = vmatprep.subr.bf16.mxu0 0
  %1110 = vmatpush1.bf16.msra.mxu0 0
  %1111 = vmatprep.mubr.bf16.mxu0 0
  %1112 = vmatmul.mubr.bf16.gmra.mrb[0].mxu0 %v1025
  %v1113 = vpop.f32.mrb[0].mxu0
  %v1114 = vadd.f32 0.0, %v1113
  %v1115 = vpop.f32.mrb[0].mxu0
  %v1116 = vpop.f32.mrb[0].mxu0
  %v1117 = vadd.f32 0.0, %v1116
  %v1118 = vpop.f32.mrb[0].mxu0
  %1119 = vmatprep.mubr.bf16.mxu0 0
  %1120 = vmatmul.mubr.bf16.gmra.mrb[0].mxu0 %v1027
  %v1121 = vpop.f32.mrb[0].mxu0
  %v1122 = vadd.f32 0.0, %v1121
  %v1123 = vpop.f32.mrb[0].mxu0
  %v1124 = vpop.f32.mrb[0].mxu0
  %v1125 = vadd.f32 0.0, %v1124
  %v1126 = vpop.f32.mrb[0].mxu0
  %1127 = vmatprep.mubr.bf16.mxu0 0
  %1128 = vmatmul.mubr.bf16.gmra.mrb[0].mxu0 %v1026
  %v1129 = vpop.f32.mrb[0].mxu0
  %v1130 = vadd.f32 0.0, %v1129
  %v1131 = vpop.f32.mrb[0].mxu0
  %v1132 = vpop.f32.mrb[0].mxu0
  %v1133 = vpop.f32.mrb[0].mxu0
  %1134 = vdwg.mxu0
  %v1135 = vadd.f32 %v982, %v1114
  %v1136 = vadd.f32 %v985, %v1117
  %v1137 = vadd.f32 %v990, %v1122
  %v1138 = vadd.f32 %v993, %v1125
  %v1139 = vadd.f32 %v998, %v1130
  %v1140 = vld [vmem:[%s4] sm:$0x3]
  %1141 = vrot.lane.b32.xlu0 %v1135, 8
  %v1142 = vpop.permute.xlu0 %1141
  %1143 = vrot.lane.b32.xlu0 %v1136, 8
  %v1144 = vpop.permute.xlu0 %1143
  %v1145 = vadd.f32 %v1135, %v1142
  %v1146 = vadd.f32 %v1136, %v1144
  %1147 = vrot.lane.b32.xlu0 %v1145, 16
  %v1148 = vpop.permute.xlu0 %1147
  %1149 = vrot.lane.b32.xlu0 %v1146, 16
  %v1150 = vpop.permute.xlu0 %1149
  %v1151 = vadd.f32 %v1145, %v1148
  %v1152 = vadd.f32 %v1146, %v1150
  %1153 = vrot.lane.b32.xlu0 %v1151, 32
  %v1154 = vpop.permute.xlu0 %1153
  %1155 = vrot.lane.b32.xlu0 %v1152, 32
  %v1156 = vpop.permute.xlu0 %1155
  %v1157 = vadd.f32 %v1151, %v1154
  %v1158 = vadd.f32 %v1152, %v1156
  %1159 = vrot.lane.b32.xlu0 %v1157, 64
  %v1160 = vpop.permute.xlu0 %1159
  %1161 = vrot.lane.b32.xlu0 %v1158, 64
  %v1162 = vpop.permute.xlu0 %1161
  %v1163 = vadd.f32 %v1157, %v1160
  %v1164 = vadd.f32 %v1158, %v1162
  %v1165 = vadd.f32 %v1163, %v1164
  %v1166 = vrot.slane %v1165, 4
  %v1167 = vadd.f32 %v1165, %v1166
  %v1168 = vrot.slane %v1167, 2
  %v1169 = vadd.f32 %v1167, %v1168
  %v1170 = vrot.slane %v1169, 1
  %v1171 = vadd.f32 %v1169, %v1170
  %v1172 = vmul.f32 %v1171, 0.00390625
  %v1173 = vsub.f32 %v1135, %v1172
  %v1174 = vsub.f32 %v1136, %v1172
  %v1175 = vmul.f32 %v1173, %v1173
  %v1176 = vmul.f32 %v1174, %v1174
  %1177 = vrot.lane.b32.xlu0 %v1175, 8
  %v1178 = vpop.permute.xlu0 %1177
  %1179 = vrot.lane.b32.xlu0 %v1176, 8
  %v1180 = vpop.permute.xlu0 %1179
  %v1181 = vadd.f32 %v1175, %v1178
  %v1182 = vadd.f32 %v1176, %v1180
  %1183 = vrot.lane.b32.xlu0 %v1181, 16
  %v1184 = vpop.permute.xlu0 %1183
  %1185 = vrot.lane.b32.xlu0 %v1182, 16
  %v1186 = vpop.permute.xlu0 %1185
  %v1187 = vadd.f32 %v1181, %v1184
  %v1188 = vadd.f32 %v1182, %v1186
  %1189 = vrot.lane.b32.xlu0 %v1187, 32
  %v1190 = vpop.permute.xlu0 %1189
  %1191 = vrot.lane.b32.xlu0 %v1188, 32
  %v1192 = vpop.permute.xlu0 %1191
  %v1193 = vadd.f32 %v1187, %v1190
  %v1194 = vadd.f32 %v1188, %v1192
  %1195 = vrot.lane.b32.xlu0 %v1193, 64
  %v1196 = vpop.permute.xlu0 %1195
  %1197 = vrot.lane.b32.xlu0 %v1194, 64
  %v1198 = vpop.permute.xlu0 %1197
  %v1199 = vadd.f32 %v1193, %v1196
  %v1200 = vadd.f32 %v1194, %v1198
  %v1201 = vadd.f32 %v1199, %v1200
  %v1202 = vrot.slane %v1201, 4
  %v1203 = vadd.f32 %v1201, %v1202
  %v1204 = vrot.slane %v1203, 2
  %v1205 = vadd.f32 %v1203, %v1204
  %v1206 = vrot.slane %v1205, 1
  %v1207 = vadd.f32 %v1205, %v1206
  %v1208 = vmul.f32 %v1207, 0.00390625
  %v1209 = vadd.f32 %v1208, 1e-05
  %v1210 = vrsqrt.pop %v1209
  %v1211 = vmul.f32 %v1210, %v1140
  %v1212 = vlaneseq
  %v1213 = vshrl.u32 %v1212, 7
  %v1214 = vsub.s32 0, %v1213
  %v1215 = vrot.slane %v1211, %v1214
  %v1216 = vmul.f32 %v1173, %v1215
  %v1217 = vmul.f32 %v1174, %v1215
  %v1218 = vlaneseq
  %v1219 = vshrl.u32 %v1218, 7
  %v1220 = vsub.s32 1, %v1219
  %v1221 = vrot.slane %v1140, %v1220
  %v1222 = vadd.f32 %v1216, %v1221
  %v1223 = vadd.f32 %v1217, %v1221
  %vm1224 = vcmp.gt.f32.partialorder %v1222, 0.0
  %vm1225 = vcmp.gt.f32.partialorder %v1223, 0.0
  %v1226 = vmul.f32 %v1222, 0.01
  %v1227 = vmul.f32 %v1223, 0.01
  %v1228 = vsel %vm1224, %v1222, %v1226
  %v1229 = vsel %vm1225, %v1223, %v1227
  %1230 = vst [vmem:[%s5] sm:$0xff] %v1228
  %1231 = vst [vmem:[%s5 + $0x8] sm:$0xff] %v1229
  %v1232 = vld [vmem:[%s4] sm:$0x3]
  %v1236 = vrot.slane %v1137, 2
  %v1237 = vrot.slane %v1138, 2
  %v1238 = vsel %vm456, %v1236, %v1237
  %v1239 = vrot.slane %v1139, 2
  %v1240 = vsel %vm456, %v1237, %v1239
  %1243 = vrot.lane.b32.xlu0 %v1238, 8
  %v1244 = vpop.permute.xlu0 %1243
  %1245 = vrot.lane.b32.xlu0 %v1240, 8
  %v1246 = vpop.permute.xlu0 %1245
  %v1249 = vrot.slane %v1244, 6
  %v1250 = vrot.slane %v1246, 6
  %v1251 = vsel %vm470, %v1249, %v1250
  %v1255 = vadd.f32 %v1137, %v1249
  %v1256 = vadd.f32 %v1138, %v1251
  %v1257 = vadd.f32 %v1139, %v1250
  %v1261 = vrot.slane %v1255, 2
  %v1262 = vrot.slane %v1256, 2
  %v1263 = vsel %vm456, %v1261, %v1262
  %v1264 = vrot.slane %v1257, 2
  %v1265 = vsel %vm456, %v1262, %v1264
  %1268 = vrot.lane.b32.xlu0 %v1263, 16
  %v1269 = vpop.permute.xlu0 %1268
  %1270 = vrot.lane.b32.xlu0 %v1265, 16
  %v1271 = vpop.permute.xlu0 %1270
  %v1274 = vrot.slane %v1269, 6
  %v1275 = vrot.slane %v1271, 6
  %v1276 = vsel %vm470, %v1274, %v1275
  %v1280 = vadd.f32 %v1255, %v1274
  %v1281 = vadd.f32 %v1256, %v1276
  %v1282 = vadd.f32 %v1257, %v1275
  %v1286 = vrot.slane %v1280, 2
  %v1287 = vrot.slane %v1281, 2
  %v1288 = vsel %vm456, %v1286, %v1287
  %v1289 = vrot.slane %v1282, 2
  %v1290 = vsel %vm456, %v1287, %v1289
  %1293 = vrot.lane.b32.xlu0 %v1288, 32
  %v1294 = vpop.permute.xlu0 %1293
  %1295 = vrot.lane.b32.xlu0 %v1290, 32
  %v1296 = vpop.permute.xlu0 %1295
  %v1299 = vrot.slane %v1294, 6
  %v1300 = vrot.slane %v1296, 6
  %v1301 = vsel %vm470, %v1299, %v1300
  %v1305 = vadd.f32 %v1280, %v1299
  %v1306 = vadd.f32 %v1281, %v1301
  %v1307 = vadd.f32 %v1282, %v1300
  %v1311 = vrot.slane %v1305, 2
  %v1312 = vrot.slane %v1306, 2
  %v1313 = vsel %vm456, %v1311, %v1312
  %v1314 = vrot.slane %v1307, 2
  %v1315 = vsel %vm456, %v1312, %v1314
  %1318 = vrot.lane.b32.xlu0 %v1313, 64
  %v1319 = vpop.permute.xlu0 %1318
  %1320 = vrot.lane.b32.xlu0 %v1315, 64
  %v1321 = vpop.permute.xlu0 %1320
  %v1324 = vrot.slane %v1319, 6
  %v1325 = vrot.slane %v1321, 6
  %v1326 = vsel %vm470, %v1324, %v1325
  %v1330 = vadd.f32 %v1305, %v1324
  %v1331 = vadd.f32 %v1306, %v1326
  %v1332 = vadd.f32 %v1307, %v1325
  %v1336 = vrot.slane %v1330, 2
  %v1337 = vrot.slane %v1331, 2
  %v1338 = vsel %vm456, %v1336, %v1337
  %v1339 = vrot.slane %v1332, 2
  %v1340 = vsel %vm456, %v1337, %v1339
  %v1343 = vadd.f32 %v1338, %v1340
  %v1344 = vrot.slane %v1343, 4
  %v1345 = vadd.f32 %v1343, %v1344
  %v1346 = vrot.slane %v1345, 2
  %v1347 = vadd.f32 %v1345, %v1346
  %v1348 = vrot.slane %v1347, 1
  %v1349 = vadd.f32 %v1347, %v1348
  %v1350 = vmul.f32 %v1349, 0.00390625
  %v1351 = vsub.f32 %v1137, %v1350
  %v1352 = vsub.f32 %v1138, %v1350
  %v1353 = vsub.f32 %v1139, %v1350
  %v1354 = vmul.f32 %v1351, %v1351
  %v1355 = vmul.f32 %v1352, %v1352
  %v1356 = vmul.f32 %v1353, %v1353
  %v1360 = vrot.slane %v1354, 2
  %v1361 = vrot.slane %v1355, 2
  %v1362 = vsel %vm456, %v1360, %v1361
  %v1363 = vrot.slane %v1356, 2
  %v1364 = vsel %vm456, %v1361, %v1363
  %1367 = vrot.lane.b32.xlu0 %v1362, 8
  %v1368 = vpop.permute.xlu0 %1367
  %1369 = vrot.lane.b32.xlu0 %v1364, 8
  %v1370 = vpop.permute.xlu0 %1369
  %v1373 = vrot.slane %v1368, 6
  %v1374 = vrot.slane %v1370, 6
  %v1375 = vsel %vm470, %v1373, %v1374
  %v1379 = vadd.f32 %v1354, %v1373
  %v1380 = vadd.f32 %v1355, %v1375
  %v1381 = vadd.f32 %v1356, %v1374
  %v1385 = vrot.slane %v1379, 2
  %v1386 = vrot.slane %v1380, 2
  %v1387 = vsel %vm456, %v1385, %v1386
  %v1388 = vrot.slane %v1381, 2
  %v1389 = vsel %vm456, %v1386, %v1388
  %1392 = vrot.lane.b32.xlu0 %v1387, 16
  %v1393 = vpop.permute.xlu0 %1392
  %1394 = vrot.lane.b32.xlu0 %v1389, 16
  %v1395 = vpop.permute.xlu0 %1394
  %v1398 = vrot.slane %v1393, 6
  %v1399 = vrot.slane %v1395, 6
  %v1400 = vsel %vm470, %v1398, %v1399
  %v1404 = vadd.f32 %v1379, %v1398
  %v1405 = vadd.f32 %v1380, %v1400
  %v1406 = vadd.f32 %v1381, %v1399
  %v1410 = vrot.slane %v1404, 2
  %v1411 = vrot.slane %v1405, 2
  %v1412 = vsel %vm456, %v1410, %v1411
  %v1413 = vrot.slane %v1406, 2
  %v1414 = vsel %vm456, %v1411, %v1413
  %1417 = vrot.lane.b32.xlu0 %v1412, 32
  %v1418 = vpop.permute.xlu0 %1417
  %1419 = vrot.lane.b32.xlu0 %v1414, 32
  %v1420 = vpop.permute.xlu0 %1419
  %v1423 = vrot.slane %v1418, 6
  %v1424 = vrot.slane %v1420, 6
  %v1425 = vsel %vm470, %v1423, %v1424
  %v1429 = vadd.f32 %v1404, %v1423
  %v1430 = vadd.f32 %v1405, %v1425
  %v1431 = vadd.f32 %v1406, %v1424
  %v1435 = vrot.slane %v1429, 2
  %v1436 = vrot.slane %v1430, 2
  %v1437 = vsel %vm456, %v1435, %v1436
  %v1438 = vrot.slane %v1431, 2
  %v1439 = vsel %vm456, %v1436, %v1438
  %1442 = vrot.lane.b32.xlu0 %v1437, 64
  %v1443 = vpop.permute.xlu0 %1442
  %1444 = vrot.lane.b32.xlu0 %v1439, 64
  %v1445 = vpop.permute.xlu0 %1444
  %v1448 = vrot.slane %v1443, 6
  %v1449 = vrot.slane %v1445, 6
  %v1450 = vsel %vm470, %v1448, %v1449
  %v1454 = vadd.f32 %v1429, %v1448
  %v1455 = vadd.f32 %v1430, %v1450
  %v1456 = vadd.f32 %v1431, %v1449
  %v1460 = vrot.slane %v1454, 2
  %v1461 = vrot.slane %v1455, 2
  %v1462 = vsel %vm456, %v1460, %v1461
  %v1463 = vrot.slane %v1456, 2
  %v1464 = vsel %vm456, %v1461, %v1463
  %v1467 = vadd.f32 %v1462, %v1464
  %v1468 = vrot.slane %v1467, 4
  %v1469 = vadd.f32 %v1467, %v1468
  %v1470 = vrot.slane %v1469, 2
  %v1471 = vadd.f32 %v1469, %v1470
  %v1472 = vrot.slane %v1471, 1
  %v1473 = vadd.f32 %v1471, %v1472
  %v1474 = vmul.f32 %v1473, 0.00390625
  %v1475 = vadd.f32 %v1474, 1e-05
  %v1476 = vrsqrt.pop %v1475
  %v1477 = vmul.f32 %v1476, %v1232
  %v1478 = vlaneseq
  %v1479 = vshrl.u32 %v1478, 7
  %v1480 = vsub.s32 0, %v1479
  %v1481 = vrot.slane %v1477, %v1480
  %v1482 = vmul.f32 %v1351, %v1481
  %v1483 = vmul.f32 %v1352, %v1481
  %v1484 = vmul.f32 %v1353, %v1481
  %v1485 = vlaneseq
  %v1486 = vshrl.u32 %v1485, 7
  %v1487 = vsub.s32 1, %v1486
  %v1488 = vrot.slane %v1232, %v1487
  %v1489 = vadd.f32 %v1482, %v1488
  %v1490 = vadd.f32 %v1483, %v1488
  %v1491 = vadd.f32 %v1484, %v1488
  %vm1492 = vcmp.gt.f32.partialorder %v1489, 0.0
  %vm1493 = vcmp.gt.f32.partialorder %v1490, 0.0
  %vm1494 = vcmp.gt.f32.partialorder %v1491, 0.0
  %v1495 = vmul.f32 %v1489, 0.01
  %v1496 = vmul.f32 %v1490, 0.01
  %v1497 = vmul.f32 %v1491, 0.01
  %v1498 = vsel %vm1492, %v1489, %v1495
  %v1499 = vsel %vm1493, %v1490, %v1496
  %v1500 = vsel %vm1494, %v1491, %v1497
  %1501 = vst [vmem:[%s5 + $0xe] sm:$0xfc] %v1498
  %1502 = vst [vmem:[%s5 + $0x16] sm:$0xff] %v1499
  %1503 = vst [vmem:[%s5 + $0x1e] sm:$0x3] %v1500
  // Predicated region
  $region22: #{conv_block_2d_forward.1} parent=0 // pred_check
    _
  $region23: #{conv_block_2d_forward.1} parent=0 // pred_check_branch
    %1505 = sbr.rel (0) target = $region25
  $region24: #{conv_block_2d_forward.1} parent=0 // pred_region
    _
  $region25: #{conv_block_2d_forward.1} parent=0 // pred_fallthru
    _
  // Predicated region
  $region26: #{conv_block_2d_forward.1} parent=0 // pred_check
    _
  $region27: #{conv_block_2d_forward.1} parent=0 // pred_check_branch
    %1507 = sbr.rel (0) target = $region29
  $region28: #{conv_block_2d_forward.1} parent=0 // pred_region
    _
  $region29: #{conv_block_2d_forward.1} parent=0 // pred_fallthru
    _

</llo_original>
